<compile_context>
chip_gen: v5e
topology: v5e:2x2
jax: 0.10.0
libtpu: 0.0.40
codegen_flags: <defaults>
</compile_context>

<pallas_src>
import functools

import jax
import jax.numpy as jnp
from jax.experimental import pallas as pl
from jax.experimental.pallas import tpu as pltpu

EPS = 1e-5          # torch.nn.LayerNorm default
ROW_TILE = 256      # rows per LN/FFN tile (multiple of 16 so bf16 also packs)
COL_TILE = 256      # lane-dense QKV column tiles (multiple of 128)
HIDDEN_TILE = 256   # FFN hidden-reduction tile (multiple of 128)


# ----------------------------------------------------------------------------
# helpers
# ----------------------------------------------------------------------------
def _round_up(n, m):
    return ((n + m - 1) // m) * m


def _pad2(a, rows, cols):
    pr, pc = rows - a.shape[0], cols - a.shape[1]
    if pr == 0 and pc == 0:
        return a
    return jnp.pad(a, ((0, pr), (0, pc)))


def _row_tile(rows, dtype):
    row_min = 16 if dtype == jnp.bfloat16 else 8   # bf16 packs 16 rows / vreg
    return min(ROW_TILE, _round_up(rows, row_min))


def _col_tile(cols, cap=COL_TILE):
    return min(cap, _round_up(cols, 128))


def _layernorm_f32(x, g, b, inv_d):
    # two-pass statistics (mean, then centered variance): matches torch and is
    # robust against cancellation when activations develop a large mean.
    mean = jnp.sum(x, axis=-1, keepdims=True) * inv_d
    xc = x - mean
    var = jnp.sum(xc * xc, axis=-1, keepdims=True) * inv_d
    return xc * jax.lax.rsqrt(var + EPS) * g + b


def _erf_f32(x):
    # Abramowitz & Stegun 7.1.26 rational approximation, |err| <= 1.5e-7.
    # torch.nn.GELU() defaults to the exact erf form; lax.erf is not
    # guaranteed to lower in Mosaic, so erf is built from exp/mul/add only.
    a1, a2, a3, a4, a5 = (0.254829592, -0.284496736, 1.421413741,
                          -1.453152027, 1.061405429)
    p = 0.3275911
    sgn = jnp.where(x < 0.0, -1.0, 1.0)
    ax = jnp.abs(x)
    t = 1.0 / (1.0 + p * ax)
    poly = ((((a5 * t + a4) * t + a3) * t + a2) * t + a1) * t
    return sgn * (1.0 - poly * jnp.exp(-ax * ax))


def _gelu_exact_f32(x):
    return 0.5 * x * (1.0 + _erf_f32(x * 0.7071067811865476))


# ----------------------------------------------------------------------------
# kernels
# ----------------------------------------------------------------------------
def _ln_qkv_kernel(x_ref, g_ref, b_ref, w_ref, qkv_ref, xn_ref, *, inv_d):
    # LN statistics + xn store only on the first column tile; the xn output
    # block's index_map is constant along the column axis so it stays resident
    # in VMEM and later column tiles just reload it.
    @pl.when(pl.program_id(1) == 0)
    def _():
        x = x_ref[...].astype(jnp.float32)
        xn = _layernorm_f32(x, g_ref[...].astype(jnp.float32),
                            b_ref[...].astype(jnp.float32), inv_d)
        xn_ref[...] = xn.astype(xn_ref.dtype)

    qkv_ref[...] = jnp.dot(
        xn_ref[...], w_ref[...],
        preferred_element_type=jnp.float32).astype(qkv_ref.dtype)


def _attn_kernel(*refs, heads, dim_head, scale, project_out):
    # TODO(synk): for long sequences this full-softmax per-batch kernel should
    # become a flash-style KV-tiled kernel (v7x VMEM is only 64 MiB).
    if project_out:
        qkv_ref, xn_ref, h_ref, w_ref, wb_ref, o_ref = refs
    else:
        qkv_ref, xn_ref, h_ref, o_ref = refs

    inner = heads * dim_head
    qkv = qkv_ref[0]                       # (n, 3*inner), native dtype
    dt = qkv.dtype

    head_outs = []
    for hh in range(heads):                # static unroll over heads
        lo = hh * dim_head
        q = qkv[:, lo:lo + dim_head]
        k = qkv[:, inner + lo:inner + lo + dim_head]
        v = qkv[:, 2 * inner + lo:2 * inner + lo + dim_head]
        s = jax.lax.dot_general(q, k, (((1,), (1,)), ((), ())),
                                preferred_element_type=jnp.float32) * scale
        s = s - jnp.max(s, axis=-1, keepdims=True)
        p = jnp.exp(s)
        l = jnp.sum(p, axis=-1, keepdims=True)
        inv_l = pl.reciprocal(l, approx=True)       # EUP seed ...
        inv_l = inv_l * (2.0 - l * inv_l)           # ... + one Newton step
        o = jnp.dot(p.astype(dt), v, preferred_element_type=jnp.float32)
        head_outs.append((o * inv_l).astype(dt))

    merged = head_outs[0] if heads == 1 else jnp.concatenate(head_outs, axis=-1)
    res = xn_ref[0].astype(jnp.float32) + h_ref[0].astype(jnp.float32)
    if project_out:
        y = jnp.dot(merged, w_ref[...], preferred_element_type=jnp.float32)
        y = y + wb_ref[...].astype(jnp.float32) + res
    else:
        y = merged.astype(jnp.float32) + res
    o_ref[0] = y.astype(o_ref.dtype)


def _ffn_kernel(x_ref, g_ref, b_ref, w1_ref, b1_ref, w2_ref, b2_ref, o_ref,
                xn_sc, acc_sc, *, inv_d):
    j = pl.program_id(1)

    @pl.when(j == 0)
    def _():
        x = x_ref[...].astype(jnp.float32)
        xn = _layernorm_f32(x, g_ref[...].astype(jnp.float32),
                            b_ref[...].astype(jnp.float32), inv_d)
        xn_sc[...] = xn.astype(xn_sc.dtype)
        # accumulator starts with the residual and the down-projection bias.
        acc_sc[...] = x + b2_ref[...].astype(jnp.float32)

    hmid = jnp.dot(xn_sc[...], w1_ref[...], preferred_element_type=jnp.float32)
    hmid = _gelu_exact_f32(hmid + b1_ref[...].astype(jnp.float32))
    acc_sc[...] += jnp.dot(hmid.astype(w2_ref.dtype), w2_ref[...],
                           preferred_element_type=jnp.float32)

    @pl.when(j == pl.num_programs(1) - 1)
    def _():
        o_ref[...] = acc_sc[...].astype(o_ref.dtype)


# ----------------------------------------------------------------------------
# wrappers (pallas_call plumbing: padding, tiling, BlockSpecs)
# ----------------------------------------------------------------------------
def _ln_qkv(x2, gamma, beta, w):
    rows, d = x2.shape
    cols = w.shape[1]
    tr = _row_tile(rows, x2.dtype)
    tn = _col_tile(cols)
    rows_p = _round_up(rows, tr)
    cols_p = _round_up(cols, tn)
    x_p = _pad2(x2, rows_p, d)
    w_p = _pad2(w, d, cols_p)
    g2 = gamma.reshape(1, d)
    b2 = beta.reshape(1, d)
    qkv, xn = pl.pallas_call(
        functools.partial(_ln_qkv_kernel, inv_d=1.0 / d),
        out_shape=(jax.ShapeDtypeStruct((rows_p, cols_p), x2.dtype),
                   jax.ShapeDtypeStruct((rows_p, d), x2.dtype)),
        grid_spec=pltpu.PrefetchScalarGridSpec(
            num_scalar_prefetch=0,
            grid=(rows_p // tr, cols_p // tn),
            in_specs=[
                pl.BlockSpec((tr, d), lambda i, j: (i, 0)),
                pl.BlockSpec((1, d), lambda i, j: (0, 0)),
                pl.BlockSpec((1, d), lambda i, j: (0, 0)),
                pl.BlockSpec((d, tn), lambda i, j: (0, j)),
            ],
            out_specs=(
                pl.BlockSpec((tr, tn), lambda i, j: (i, j)),
                pl.BlockSpec((tr, d), lambda i, j: (i, 0)),
            ),
        ),
        compiler_params=pltpu.CompilerParams(
            dimension_semantics=("parallel", "arbitrary")),
    )(x_p, g2, b2, w_p)
    return qkv[:rows, :cols], xn[:rows]


def _attention_block(qkv3, xn3, h3, w_out, b_out, *, heads, dim_head, scale):
    b, n, d = h3.shape
    inner = heads * dim_head
    project_out = w_out is not None
    in_specs = [
        pl.BlockSpec((1, n, 3 * inner), lambda i: (i, 0, 0)),
        pl.BlockSpec((1, n, d), lambda i: (i, 0, 0)),
        pl.BlockSpec((1, n, d), lambda i: (i, 0, 0)),
    ]
    args = [qkv3, xn3, h3]
    if project_out:
        in_specs += [pl.BlockSpec((inner, d), lambda i: (0, 0)),
                     pl.BlockSpec((1, d), lambda i: (0, 0))]
        args += [w_out, b_out.reshape(1, d)]
    return pl.pallas_call(
        functools.partial(_attn_kernel, heads=heads, dim_head=dim_head,
                          scale=scale, project_out=project_out),
        out_shape=jax.ShapeDtypeStruct((b, n, d), h3.dtype),
        grid_spec=pltpu.PrefetchScalarGridSpec(
            num_scalar_prefetch=0,
            grid=(b,),
            in_specs=in_specs,
            out_specs=pl.BlockSpec((1, n, d), lambda i: (i, 0, 0)),
        ),
        compiler_params=pltpu.CompilerParams(
            dimension_semantics=("parallel",)),
    )(*args)


def _ffn(x2, gamma, beta, w1, b1, w2, b2):
    rows, d = x2.shape
    hdim = w1.shape[1]
    tr = _row_tile(rows, x2.dtype)
    th = _col_tile(hdim, HIDDEN_TILE)
    rows_p = _round_up(rows, tr)
    h_p = _round_up(hdim, th)
    x_p = _pad2(x2, rows_p, d)
    w1_p = _pad2(w1, d, h_p)
    b1_p = _pad2(b1.reshape(1, hdim), 1, h_p)
    w2_p = _pad2(w2, h_p, d)
    g2 = gamma.reshape(1, d)
    be2 = beta.reshape(1, d)
    b2r = b2.reshape(1, d)
    out = pl.pallas_call(
        functools.partial(_ffn_kernel, inv_d=1.0 / d),
        out_shape=jax.ShapeDtypeStruct((rows_p, d), x2.dtype),
        grid_spec=pltpu.PrefetchScalarGridSpec(
            num_scalar_prefetch=0,
            grid=(rows_p // tr, h_p // th),
            in_specs=[
                pl.BlockSpec((tr, d), lambda i, j: (i, 0)),   # x (residual)
                pl.BlockSpec((1, d), lambda i, j: (0, 0)),    # LN gamma
                pl.BlockSpec((1, d), lambda i, j: (0, 0)),    # LN beta
                pl.BlockSpec((d, th), lambda i, j: (0, j)),   # W1 tile
                pl.BlockSpec((1, th), lambda i, j: (0, j)),   # b1 tile
                pl.BlockSpec((th, d), lambda i, j: (j, 0)),   # W2 tile
                pl.BlockSpec((1, d), lambda i, j: (0, 0)),    # b2
            ],
            out_specs=pl.BlockSpec((tr, d), lambda i, j: (i, 0)),
            scratch_shapes=[pltpu.VMEM((tr, d), x2.dtype),     # resident xn
                            pltpu.VMEM((tr, d), jnp.float32)], # f32 accum
        ),
        compiler_params=pltpu.CompilerParams(
            dimension_semantics=("parallel", "arbitrary")),
    )(x_p, g2, be2, w1_p, b1_p, w2_p, b2r)
    return out[:rows]


# ----------------------------------------------------------------------------
# full Transformer forward
# ----------------------------------------------------------------------------
def transformer_forward(x, layers, *, heads, dim_head):
    # TODO(synk): Attention.forward references self.norm which the PyTorch
    # module never defines; it is treated as identity here (PreNorm already
    # applies the LayerNorm).  nn.Dropout(p=0.0) is an identity and omitted.
    b, n, d = x.shape
    rows = b * n
    inner = heads * dim_head
    scale = float(dim_head) ** -0.5
    project_out = not (heads == 1 and dim_head == d)
    h2 = x.reshape(rows, d)

    for p in layers:
        # --- PreNorm(Attention) + residual ---
        qkv2, xn2 = _ln_qkv(h2, p["ln1_g"], p["ln1_b"], p["w_qkv"])
        qkv3 = qkv2.reshape(b, n, 3 * inner)
        xn3 = xn2.reshape(b, n, d)
        h3 = h2.reshape(b, n, d)
        w_out = p["w_out"] if project_out else None
        b_out = p["b_out"] if project_out else None
        h3 = _attention_block(qkv3, xn3, h3, w_out, b_out,
                              heads=heads, dim_head=dim_head, scale=scale)
        h2 = h3.reshape(rows, d)

        # --- PreNorm(FeedForward) + residual (fully fused, no HBM hidden) ---
        h2 = _ffn(h2, p["ln2_g"], p["ln2_b"], p["w1"], p["b1"],
                  p["w2"], p["b2"])

    return h2.reshape(b, n, d)


# ----------------------------------------------------------------------------
# pure-JAX reference
# ----------------------------------------------------------------------------
def _ref_layernorm(x, g, b):
    m = jnp.mean(x, axis=-1, keepdims=True)
    v = jnp.mean((x - m) ** 2, axis=-1, keepdims=True)
    return (x - m) / jnp.sqrt(v + EPS) * g + b


def _ref_transformer(x, layers, heads, dim_head):
    b, n, d = x.shape
    inner = heads * dim_head
    scale = dim_head ** -0.5
    project_out = not (heads == 1 and dim_head == d)
    h = x.astype(jnp.float32)
    for p in layers:
        xn = _ref_layernorm(h, p["ln1_g"], p["ln1_b"])
        qkv = xn @ p["w_qkv"]
        q, k, v = jnp.split(qkv, 3, axis=-1)

        def sh(t):
            return t.reshape(b, n, heads, dim_head).transpose(0, 2, 1, 3)

        qh, kh, vh = sh(q), sh(k), sh(v)
        dots = jnp.einsum("bhid,bhjd->bhij", qh, kh) * scale
        attn = jax.nn.softmax(dots, axis=-1)
        out = jnp.einsum("bhij,bhjd->bhid", attn, vh)
        merged = out.transpose(0, 2, 1, 3).reshape(b, n, inner)
        proj = merged @ p["w_out"] + p["b_out"] if project_out else merged
        h = proj + xn + h
        xn2 = _ref_layernorm(h, p["ln2_g"], p["ln2_b"])
        hid = jax.nn.gelu(xn2 @ p["w1"] + p["b1"], approximate=False)
        h = hid @ p["w2"] + p["b2"] + h
    return h.astype(x.dtype)


# ----------------------------------------------------------------------------
if __name__ == "__main__":
    key = jax.random.PRNGKey(0)
    B, N, DIM = 2, 8, 32
    DEPTH, HEADS, DIM_HEAD, MLP_DIM = 2, 2, 16, 64
    INNER = HEADS * DIM_HEAD

    key, xk = jax.random.split(key)
    x = jax.random.normal(xk, (B, N, DIM), dtype=jnp.float32)

    layers = []
    for _ in range(DEPTH):
        key, *ks = jax.random.split(key, 13)

        def nrm(k, shape, scl=1.0):
            return scl * jax.random.normal(k, shape, dtype=jnp.float32)

        layers.append(dict(
            ln1_g=1.0 + nrm(ks[0], (DIM,), 0.05),
            ln1_b=nrm(ks[1], (DIM,), 0.05),
            w_qkv=nrm(ks[2], (DIM, 3 * INNER), DIM ** -0.5),
            w_out=nrm(ks[3], (INNER, DIM), INNER ** -0.5),
            b_out=nrm(ks[4], (DIM,), 0.01),
            ln2_g=1.0 + nrm(ks[5], (DIM,), 0.05),
            ln2_b=nrm(ks[6], (DIM,), 0.05),
            w1=nrm(ks[7], (DIM, MLP_DIM), DIM ** -0.5),
            b1=nrm(ks[8], (MLP_DIM,), 0.01),
            w2=nrm(ks[9], (MLP_DIM, DIM), MLP_DIM ** -0.5),
            b2=nrm(ks[10], (DIM,), 0.01),
        ))

    fwd = jax.jit(functools.partial(transformer_forward,
                                    heads=HEADS, dim_head=DIM_HEAD))
    y = fwd(x, layers)
    jax.block_until_ready(y)

    y_ref = _ref_transformer(x, layers, HEADS, DIM_HEAD)
    assert y.shape == (B, N, DIM)
    assert jnp.allclose(y, y_ref, atol=1e-3, rtol=1e-3), "mismatch vs reference"
    print("KERNEL_OK")
</pallas_src>

<mosaic_0001>
module attributes {stable_mosaic.version = 11 : i64} {
  func.func @_attn_kernel(%arg0: i32, %arg1: memref<1x8x96xf32, #tpu.memory_space<vmem>>, %arg2: memref<1x8x32xf32, #tpu.memory_space<vmem>>, %arg3: memref<1x8x32xf32, #tpu.memory_space<vmem>>, %arg4: memref<32x32xf32, #tpu.memory_space<vmem>>, %arg5: memref<1x32xf32, #tpu.memory_space<vmem>>, %arg6: memref<1x8x32xf32, #tpu.memory_space<vmem>>) attributes {dimension_semantics = [#tpu.dimension_semantics<parallel>], iteration_bounds = array<i64: 2>, scalar_prefetch = 0 : i64, scratch_operands = 0 : i64, tpu.core_type = #tpu.core_type<tc>, window_params = [{transform_indices = @transform_0, window_bounds = array<i64: 1, 8, 96>}, {transform_indices = @transform_1, window_bounds = array<i64: 1, 8, 32>}, {transform_indices = @transform_2, window_bounds = array<i64: 1, 8, 32>}, {pipeline_mode = #tpu.pipeline_mode<synchronous>, transform_indices = @transform_3, window_bounds = array<i64: 32, 32>}, {pipeline_mode = #tpu.pipeline_mode<synchronous>, transform_indices = @transform_4, window_bounds = array<i64: 1, 32>}, {transform_indices = @transform_5, window_bounds = array<i64: 1, 8, 32>}]} {
    %c0 = arith.constant 0 : index
    %c0_0 = arith.constant 0 : index
    %c0_1 = arith.constant 0 : index
    %0 = vector.load %arg1[%c0, %c0_0, %c0_1] : memref<1x8x96xf32, #tpu.memory_space<vmem>>, vector<1x8x96xf32>
    %1 = vector.shape_cast %0 : vector<1x8x96xf32> to vector<8x96xf32>
    %2 = vector.extract_strided_slice %1 {offsets = [0, 0], sizes = [8, 16], strides = [1, 1]} : vector<8x96xf32> to vector<8x16xf32>
    %3 = vector.extract_strided_slice %1 {offsets = [0, 32], sizes = [8, 16], strides = [1, 1]} : vector<8x96xf32> to vector<8x16xf32>
    %4 = vector.extract_strided_slice %1 {offsets = [0, 64], sizes = [8, 16], strides = [1, 1]} : vector<8x96xf32> to vector<8x16xf32>
    %cst = arith.constant dense<0.000000e+00> : vector<8x8xf32>
    %5 = tpu.matmul %2, %3, %cst {dimension_numbers = #tpu.dot_dimension_numbers<[1], [1], [0], [0], [0, 0, 1, 0], [], []>} : vector<8x16xf32>, vector<8x16xf32>, vector<8x8xf32> -> vector<8x8xf32>
    %cst_2 = arith.constant 2.500000e-01 : f32
    %6 = vector.broadcast %cst_2 : f32 to vector<8x8xf32>
    %7 = arith.mulf %5, %6 : vector<8x8xf32>
    %cst_3 = arith.constant dense<0xFF800000> : vector<8xf32>
    %8 = vector.multi_reduction <maximumf>, %7, %cst_3 [1] : vector<8x8xf32> to vector<8xf32>
    %9 = vector.shape_cast %8 : vector<8xf32> to vector<8x1xf32>
    %10 = vector.broadcast %9 : vector<8x1xf32> to vector<8x8xf32>
    %11 = arith.subf %7, %10 : vector<8x8xf32>
    %12 = math.exp %11 : vector<8x8xf32>
    %cst_4 = arith.constant dense<0.000000e+00> : vector<8xf32>
    %13 = vector.multi_reduction <add>, %12, %cst_4 [1] : vector<8x8xf32> to vector<8xf32>
    %14 = vector.shape_cast %13 : vector<8xf32> to vector<8x1xf32>
    %15 = tpu.reciprocal %14 {approx = true} : vector<8x1xf32> -> vector<8x1xf32>
    %16 = arith.mulf %14, %15 : vector<8x1xf32>
    %cst_5 = arith.constant 2.000000e+00 : f32
    %17 = vector.broadcast %cst_5 : f32 to vector<8x1xf32>
    %18 = arith.subf %17, %16 : vector<8x1xf32>
    %19 = arith.mulf %15, %18 : vector<8x1xf32>
    %cst_6 = arith.constant dense<0.000000e+00> : vector<8x16xf32>
    %20 = tpu.matmul %12, %4, %cst_6 {dimension_numbers = #tpu.dot_dimension_numbers<[1], [0], [0], [1], [0, 0, 1, 1], [], []>} : vector<8x8xf32>, vector<8x16xf32>, vector<8x16xf32> -> vector<8x16xf32>
    %21 = vector.broadcast %19 : vector<8x1xf32> to vector<8x16xf32>
    %22 = arith.mulf %20, %21 : vector<8x16xf32>
    %23 = vector.extract_strided_slice %1 {offsets = [0, 16], sizes = [8, 16], strides = [1, 1]} : vector<8x96xf32> to vector<8x16xf32>
    %24 = vector.extract_strided_slice %1 {offsets = [0, 48], sizes = [8, 16], strides = [1, 1]} : vector<8x96xf32> to vector<8x16xf32>
    %25 = vector.extract_strided_slice %1 {offsets = [0, 80], sizes = [8, 16], strides = [1, 1]} : vector<8x96xf32> to vector<8x16xf32>
    %cst_7 = arith.constant dense<0.000000e+00> : vector<8x8xf32>
    %26 = tpu.matmul %23, %24, %cst_7 {dimension_numbers = #tpu.dot_dimension_numbers<[1], [1], [0], [0], [0, 0, 1, 0], [], []>} : vector<8x16xf32>, vector<8x16xf32>, vector<8x8xf32> -> vector<8x8xf32>
    %cst_8 = arith.constant 2.500000e-01 : f32
    %27 = vector.broadcast %cst_8 : f32 to vector<8x8xf32>
    %28 = arith.mulf %26, %27 : vector<8x8xf32>
    %cst_9 = arith.constant dense<0xFF800000> : vector<8xf32>
    %29 = vector.multi_reduction <maximumf>, %28, %cst_9 [1] : vector<8x8xf32> to vector<8xf32>
    %30 = vector.shape_cast %29 : vector<8xf32> to vector<8x1xf32>
    %31 = vector.broadcast %30 : vector<8x1xf32> to vector<8x8xf32>
    %32 = arith.subf %28, %31 : vector<8x8xf32>
    %33 = math.exp %32 : vector<8x8xf32>
    %cst_10 = arith.constant dense<0.000000e+00> : vector<8xf32>
    %34 = vector.multi_reduction <add>, %33, %cst_10 [1] : vector<8x8xf32> to vector<8xf32>
    %35 = vector.shape_cast %34 : vector<8xf32> to vector<8x1xf32>
    %36 = tpu.reciprocal %35 {approx = true} : vector<8x1xf32> -> vector<8x1xf32>
    %37 = arith.mulf %35, %36 : vector<8x1xf32>
    %cst_11 = arith.constant 2.000000e+00 : f32
    %38 = vector.broadcast %cst_11 : f32 to vector<8x1xf32>
    %39 = arith.subf %38, %37 : vector<8x1xf32>
    %40 = arith.mulf %36, %39 : vector<8x1xf32>
    %cst_12 = arith.constant dense<0.000000e+00> : vector<8x16xf32>
    %41 = tpu.matmul %33, %25, %cst_12 {dimension_numbers = #tpu.dot_dimension_numbers<[1], [0], [0], [1], [0, 0, 1, 1], [], []>} : vector<8x8xf32>, vector<8x16xf32>, vector<8x16xf32> -> vector<8x16xf32>
    %42 = vector.broadcast %40 : vector<8x1xf32> to vector<8x16xf32>
    %43 = arith.mulf %41, %42 : vector<8x16xf32>
    %44 = tpu.concatenate %22, %43 in 1 : vector<8x16xf32>, vector<8x16xf32> -> vector<8x32xf32>
    %c0_13 = arith.constant 0 : index
    %c0_14 = arith.constant 0 : index
    %c0_15 = arith.constant 0 : index
    %45 = vector.load %arg2[%c0_13, %c0_14, %c0_15] : memref<1x8x32xf32, #tpu.memory_space<vmem>>, vector<1x8x32xf32>
    %46 = vector.shape_cast %45 : vector<1x8x32xf32> to vector<8x32xf32>
    %c0_16 = arith.constant 0 : index
    %c0_17 = arith.constant 0 : index
    %c0_18 = arith.constant 0 : index
    %47 = vector.load %arg3[%c0_16, %c0_17, %c0_18] : memref<1x8x32xf32, #tpu.memory_space<vmem>>, vector<1x8x32xf32>
    %48 = vector.shape_cast %47 : vector<1x8x32xf32> to vector<8x32xf32>
    %49 = arith.addf %46, %48 : vector<8x32xf32>
    %c0_19 = arith.constant 0 : index
    %c0_20 = arith.constant 0 : index
    %50 = vector.load %arg4[%c0_19, %c0_20] : memref<32x32xf32, #tpu.memory_space<vmem>>, vector<32x32xf32>
    %cst_21 = arith.constant dense<0.000000e+00> : vector<8x32xf32>
    %51 = tpu.matmul %44, %50, %cst_21 {dimension_numbers = #tpu.dot_dimension_numbers<[1], [0], [0], [1], [0, 0, 1, 1], [], []>} : vector<8x32xf32>, vector<32x32xf32>, vector<8x32xf32> -> vector<8x32xf32>
    %c0_22 = arith.constant 0 : index
    %c0_23 = arith.constant 0 : index
    %52 = vector.load %arg5[%c0_22, %c0_23] : memref<1x32xf32, #tpu.memory_space<vmem>>, vector<1x32xf32>
    %53 = vector.broadcast %52 : vector<1x32xf32> to vector<8x32xf32>
    %54 = arith.addf %51, %53 : vector<8x32xf32>
    %55 = arith.addf %54, %49 : vector<8x32xf32>
    %c0_24 = arith.constant 0 : index
    %c0_25 = arith.constant 0 : index
    %c0_26 = arith.constant 0 : index
    %56 = vector.load %arg6[%c0_24, %c0_25, %c0_26] : memref<1x8x32xf32, #tpu.memory_space<vmem>>, vector<1x8x32xf32>
    %57 = vector.shape_cast %56 : vector<1x8x32xf32> to vector<8x32xf32>
    %58 = vector.shape_cast %55 : vector<8x32xf32> to vector<1x8x32xf32>
    tpu.vector_store %arg6[%c0_24, %c0_25, %c0_26], %58 {strides = array<i32>} : memref<1x8x32xf32, #tpu.memory_space<vmem>>, vector<1x8x32xf32>,
    return
  }
  func.func @transform_0(%arg0: i32) -> (i32, i32, i32) {
    %c0_i32 = arith.constant 0 : i32
    %c0_i32_0 = arith.constant 0 : i32
    %c0_i32_1 = arith.constant 0 : i32
    return %arg0, %c0_i32, %c0_i32_0 : i32, i32, i32
  }
  func.func @transform_1(%arg0: i32) -> (i32, i32, i32) {
    %c0_i32 = arith.constant 0 : i32
    %c0_i32_0 = arith.constant 0 : i32
    %c0_i32_1 = arith.constant 0 : i32
    return %arg0, %c0_i32, %c0_i32_0 : i32, i32, i32
  }
  func.func @transform_2(%arg0: i32) -> (i32, i32, i32) {
    %c0_i32 = arith.constant 0 : i32
    %c0_i32_0 = arith.constant 0 : i32
    %c0_i32_1 = arith.constant 0 : i32
    return %arg0, %c0_i32, %c0_i32_0 : i32, i32, i32
  }
  func.func @transform_3(%arg0: i32) -> (i32, i32) {
    %c0_i32 = arith.constant 0 : i32
    %c0_i32_0 = arith.constant 0 : i32
    %c0_i32_1 = arith.constant 0 : i32
    return %c0_i32, %c0_i32_0 : i32, i32
  }
  func.func @transform_4(%arg0: i32) -> (i32, i32) {
    %c0_i32 = arith.constant 0 : i32
    %c0_i32_0 = arith.constant 0 : i32
    %c0_i32_1 = arith.constant 0 : i32
    return %c0_i32, %c0_i32_0 : i32, i32
  }
  func.func @transform_5(%arg0: i32) -> (i32, i32, i32) {
    %c0_i32 = arith.constant 0 : i32
    %c0_i32_0 = arith.constant 0 : i32
    %c0_i32_1 = arith.constant 0 : i32
    return %arg0, %c0_i32, %c0_i32_0 : i32, i32, i32
  }
}

module attributes {stable_mosaic.version = 11 : i64} {
  func.func @_ln_qkv_kernel(%arg0: i32, %arg1: i32, %arg2: memref<16x32xf32, #tpu.memory_space<vmem>>, %arg3: memref<1x32xf32, #tpu.memory_space<vmem>>, %arg4: memref<1x32xf32, #tpu.memory_space<vmem>>, %arg5: memref<32x128xf32, #tpu.memory_space<vmem>>, %arg6: memref<16x128xf32, #tpu.memory_space<vmem>>, %arg7: memref<16x32xf32, #tpu.memory_space<vmem>>) attributes {dimension_semantics = [#tpu.dimension_semantics<parallel>, #tpu.dimension_semantics<arbitrary>], iteration_bounds = array<i64: 1, 1>, scalar_prefetch = 0 : i64, scratch_operands = 0 : i64, tpu.core_type = #tpu.core_type<tc>, window_params = [{transform_indices = @transform_0, window_bounds = array<i64: 16, 32>}, {pipeline_mode = #tpu.pipeline_mode<synchronous>, transform_indices = @transform_1, window_bounds = array<i64: 1, 32>}, {pipeline_mode = #tpu.pipeline_mode<synchronous>, transform_indices = @transform_2, window_bounds = array<i64: 1, 32>}, {transform_indices = @transform_3, window_bounds = array<i64: 32, 128>}, {transform_indices = @transform_4, window_bounds = array<i64: 16, 128>}, {transform_indices = @transform_5, window_bounds = array<i64: 16, 32>}]} {
    %c0_i32 = arith.constant 0 : i32
    %0 = arith.cmpi eq, %arg1, %c0_i32 : i32
    %1 = arith.extui %0 : i1 to i32
    %c0_i32_0 = arith.constant 0 : i32
    %2 = arith.cmpi ne, %1, %c0_i32_0 : i32
    scf.if %2 {
      %c0_6 = arith.constant 0 : index
      %c0_7 = arith.constant 0 : index
      %7 = vector.load %arg2[%c0_6, %c0_7] : memref<16x32xf32, #tpu.memory_space<vmem>>, vector<16x32xf32>
      %c0_8 = arith.constant 0 : index
      %c0_9 = arith.constant 0 : index
      %8 = vector.load %arg3[%c0_8, %c0_9] : memref<1x32xf32, #tpu.memory_space<vmem>>, vector<1x32xf32>
      %c0_10 = arith.constant 0 : index
      %c0_11 = arith.constant 0 : index
      %9 = vector.load %arg4[%c0_10, %c0_11] : memref<1x32xf32, #tpu.memory_space<vmem>>, vector<1x32xf32>
      %cst_12 = arith.constant dense<0.000000e+00> : vector<16xf32>
      %10 = vector.multi_reduction <add>, %7, %cst_12 [1] : vector<16x32xf32> to vector<16xf32>
      %11 = vector.shape_cast %10 : vector<16xf32> to vector<16x1xf32>
      %cst_13 = arith.constant 3.125000e-02 : f32
      %12 = vector.broadcast %cst_13 : f32 to vector<16x1xf32>
      %13 = arith.mulf %11, %12 : vector<16x1xf32>
      %14 = vector.broadcast %13 : vector<16x1xf32> to vector<16x32xf32>
      %15 = arith.subf %7, %14 : vector<16x32xf32>
      %16 = arith.mulf %15, %15 : vector<16x32xf32>
      %cst_14 = arith.constant dense<0.000000e+00> : vector<16xf32>
      %17 = vector.multi_reduction <add>, %16, %cst_14 [1] : vector<16x32xf32> to vector<16xf32>
      %18 = vector.shape_cast %17 : vector<16xf32> to vector<16x1xf32>
      %cst_15 = arith.constant 3.125000e-02 : f32
      %19 = vector.broadcast %cst_15 : f32 to vector<16x1xf32>
      %20 = arith.mulf %18, %19 : vector<16x1xf32>
      %cst_16 = arith.constant 9.99999974E-6 : f32
      %21 = vector.broadcast %cst_16 : f32 to vector<16x1xf32>
      %22 = arith.addf %20, %21 : vector<16x1xf32>
      %23 = math.rsqrt %22 : vector<16x1xf32>
      %24 = vector.broadcast %23 : vector<16x1xf32> to vector<16x32xf32>
      %25 = arith.mulf %15, %24 : vector<16x32xf32>
      %26 = vector.broadcast %8 : vector<1x32xf32> to vector<16x32xf32>
      %27 = arith.mulf %25, %26 : vector<16x32xf32>
      %28 = vector.broadcast %9 : vector<1x32xf32> to vector<16x32xf32>
      %29 = arith.addf %27, %28 : vector<16x32xf32>
      %c0_17 = arith.constant 0 : index
      %c0_18 = arith.constant 0 : index
      %30 = vector.load %arg7[%c0_17, %c0_18] : memref<16x32xf32, #tpu.memory_space<vmem>>, vector<16x32xf32>
      tpu.vector_store %arg7[%c0_17, %c0_18], %29 {strides = array<i32>} : memref<16x32xf32, #tpu.memory_space<vmem>>, vector<16x32xf32>,
    } else {
    }
    %c0 = arith.constant 0 : index
    %c0_1 = arith.constant 0 : index
    %3 = vector.load %arg7[%c0, %c0_1] : memref<16x32xf32, #tpu.memory_space<vmem>>, vector<16x32xf32>
    %c0_2 = arith.constant 0 : index
    %c0_3 = arith.constant 0 : index
    %4 = vector.load %arg5[%c0_2, %c0_3] : memref<32x128xf32, #tpu.memory_space<vmem>>, vector<32x128xf32>
    %cst = arith.constant dense<0.000000e+00> : vector<16x128xf32>
    %5 = tpu.matmul %3, %4, %cst {dimension_numbers = #tpu.dot_dimension_numbers<[1], [0], [0], [1], [0, 0, 1, 1], [], []>} : vector<16x32xf32>, vector<32x128xf32>, vector<16x128xf32> -> vector<16x128xf32>
    %c0_4 = arith.constant 0 : index
    %c0_5 = arith.constant 0 : index
    %6 = vector.load %arg6[%c0_4, %c0_5] : memref<16x128xf32, #tpu.memory_space<vmem>>, vector<16x128xf32>
    tpu.vector_store %arg6[%c0_4, %c0_5], %5 {strides = array<i32>} : memref<16x128xf32, #tpu.memory_space<vmem>>, vector<16x128xf32>,
    return
  }
  func.func @transform_0(%arg0: i32, %arg1: i32) -> (i32, i32) {
    %c0_i32 = arith.constant 0 : i32
    %c0_i32_0 = arith.constant 0 : i32
    return %arg0, %c0_i32 : i32, i32
  }
  func.func @transform_1(%arg0: i32, %arg1: i32) -> (i32, i32) {
    %c0_i32 = arith.constant 0 : i32
    %c0_i32_0 = arith.constant 0 : i32
    %c0_i32_1 = arith.constant 0 : i32
    return %c0_i32, %c0_i32_0 : i32, i32
  }
  func.func @transform_2(%arg0: i32, %arg1: i32) -> (i32, i32) {
    %c0_i32 = arith.constant 0 : i32
    %c0_i32_0 = arith.constant 0 : i32
    %c0_i32_1 = arith.constant 0 : i32
    return %c0_i32, %c0_i32_0 : i32, i32
  }
  func.func @transform_3(%arg0: i32, %arg1: i32) -> (i32, i32) {
    %c0_i32 = arith.constant 0 : i32
    %c0_i32_0 = arith.constant 0 : i32
    return %c0_i32, %arg1 : i32, i32
  }
  func.func @transform_4(%arg0: i32, %arg1: i32) -> (i32, i32) {
    %c0_i32 = arith.constant 0 : i32
    return %arg0, %arg1 : i32, i32
  }
  func.func @transform_5(%arg0: i32, %arg1: i32) -> (i32, i32) {
    %c0_i32 = arith.constant 0 : i32
    %c0_i32_0 = arith.constant 0 : i32
    return %arg0, %c0_i32 : i32, i32
  }
}

module attributes {stable_mosaic.version = 11 : i64} {
  func.func @_ffn_kernel(%arg0: i32, %arg1: i32, %arg2: memref<16x32xf32, #tpu.memory_space<vmem>>, %arg3: memref<1x32xf32, #tpu.memory_space<vmem>>, %arg4: memref<1x32xf32, #tpu.memory_space<vmem>>, %arg5: memref<32x128xf32, #tpu.memory_space<vmem>>, %arg6: memref<1x128xf32, #tpu.memory_space<vmem>>, %arg7: memref<128x32xf32, #tpu.memory_space<vmem>>, %arg8: memref<1x32xf32, #tpu.memory_space<vmem>>, %arg9: memref<16x32xf32, #tpu.memory_space<vmem>>, %arg10: memref<16x32xf32, #tpu.memory_space<vmem>>, %arg11: memref<16x32xf32, #tpu.memory_space<vmem>>) attributes {dimension_semantics = [#tpu.dimension_semantics<parallel>, #tpu.dimension_semantics<arbitrary>], iteration_bounds = array<i64: 1, 1>, scalar_prefetch = 0 : i64, scratch_operands = 2 : i64, tpu.core_type = #tpu.core_type<tc>, window_params = [{transform_indices = @transform_0, window_bounds = array<i64: 16, 32>}, {pipeline_mode = #tpu.pipeline_mode<synchronous>, transform_indices = @transform_1, window_bounds = array<i64: 1, 32>}, {pipeline_mode = #tpu.pipeline_mode<synchronous>, transform_indices = @transform_2, window_bounds = array<i64: 1, 32>}, {transform_indices = @transform_3, window_bounds = array<i64: 32, 128>}, {transform_indices = @transform_4, window_bounds = array<i64: 1, 128>}, {transform_indices = @transform_5, window_bounds = array<i64: 128, 32>}, {pipeline_mode = #tpu.pipeline_mode<synchronous>, transform_indices = @transform_6, window_bounds = array<i64: 1, 32>}, {transform_indices = @transform_7, window_bounds = array<i64: 16, 32>}]} {
    %c0_i32 = arith.constant 0 : i32
    %0 = arith.cmpi eq, %arg1, %c0_i32 : i32
    %1 = arith.extui %0 : i1 to i32
    %c0_i32_0 = arith.constant 0 : i32
    %2 = arith.cmpi ne, %1, %c0_i32_0 : i32
    scf.if %2 {
      %c0_31 = arith.constant 0 : index
      %c0_32 = arith.constant 0 : index
      %58 = vector.load %arg2[%c0_31, %c0_32] : memref<16x32xf32, #tpu.memory_space<vmem>>, vector<16x32xf32>
      %c0_33 = arith.constant 0 : index
      %c0_34 = arith.constant 0 : index
      %59 = vector.load %arg3[%c0_33, %c0_34] : memref<1x32xf32, #tpu.memory_space<vmem>>, vector<1x32xf32>
      %c0_35 = arith.constant 0 : index
      %c0_36 = arith.constant 0 : index
      %60 = vector.load %arg4[%c0_35, %c0_36] : memref<1x32xf32, #tpu.memory_space<vmem>>, vector<1x32xf32>
      %cst_37 = arith.constant dense<0.000000e+00> : vector<16xf32>
      %61 = vector.multi_reduction <add>, %58, %cst_37 [1] : vector<16x32xf32> to vector<16xf32>
      %62 = vector.shape_cast %61 : vector<16xf32> to vector<16x1xf32>
      %cst_38 = arith.constant 3.125000e-02 : f32
      %63 = vector.broadcast %cst_38 : f32 to vector<16x1xf32>
      %64 = arith.mulf %62, %63 : vector<16x1xf32>
      %65 = vector.broadcast %64 : vector<16x1xf32> to vector<16x32xf32>
      %66 = arith.subf %58, %65 : vector<16x32xf32>
      %67 = arith.mulf %66, %66 : vector<16x32xf32>
      %cst_39 = arith.constant dense<0.000000e+00> : vector<16xf32>
      %68 = vector.multi_reduction <add>, %67, %cst_39 [1] : vector<16x32xf32> to vector<16xf32>
      %69 = vector.shape_cast %68 : vector<16xf32> to vector<16x1xf32>
      %cst_40 = arith.constant 3.125000e-02 : f32
      %70 = vector.broadcast %cst_40 : f32 to vector<16x1xf32>
      %71 = arith.mulf %69, %70 : vector<16x1xf32>
      %cst_41 = arith.constant 9.99999974E-6 : f32
      %72 = vector.broadcast %cst_41 : f32 to vector<16x1xf32>
      %73 = arith.addf %71, %72 : vector<16x1xf32>
      %74 = math.rsqrt %73 : vector<16x1xf32>
      %75 = vector.broadcast %74 : vector<16x1xf32> to vector<16x32xf32>
      %76 = arith.mulf %66, %75 : vector<16x32xf32>
      %77 = vector.broadcast %59 : vector<1x32xf32> to vector<16x32xf32>
      %78 = arith.mulf %76, %77 : vector<16x32xf32>
      %79 = vector.broadcast %60 : vector<1x32xf32> to vector<16x32xf32>
      %80 = arith.addf %78, %79 : vector<16x32xf32>
      %c0_42 = arith.constant 0 : index
      %c0_43 = arith.constant 0 : index
      %81 = vector.load %arg10[%c0_42, %c0_43] : memref<16x32xf32, #tpu.memory_space<vmem>>, vector<16x32xf32>
      tpu.vector_store %arg10[%c0_42, %c0_43], %80 {strides = array<i32>} : memref<16x32xf32, #tpu.memory_space<vmem>>, vector<16x32xf32>,
      %c0_44 = arith.constant 0 : index
      %c0_45 = arith.constant 0 : index
      %82 = vector.load %arg8[%c0_44, %c0_45] : memref<1x32xf32, #tpu.memory_space<vmem>>, vector<1x32xf32>
      %83 = vector.broadcast %82 : vector<1x32xf32> to vector<16x32xf32>
      %84 = arith.addf %58, %83 : vector<16x32xf32>
      %c0_46 = arith.constant 0 : index
      %c0_47 = arith.constant 0 : index
      %85 = vector.load %arg11[%c0_46, %c0_47] : memref<16x32xf32, #tpu.memory_space<vmem>>, vector<16x32xf32>
      tpu.vector_store %arg11[%c0_46, %c0_47], %84 {strides = array<i32>} : memref<16x32xf32, #tpu.memory_space<vmem>>, vector<16x32xf32>,
    } else {
    }
    %c0 = arith.constant 0 : index
    %c0_1 = arith.constant 0 : index
    %3 = vector.load %arg10[%c0, %c0_1] : memref<16x32xf32, #tpu.memory_space<vmem>>, vector<16x32xf32>
    %c0_2 = arith.constant 0 : index
    %c0_3 = arith.constant 0 : index
    %4 = vector.load %arg5[%c0_2, %c0_3] : memref<32x128xf32, #tpu.memory_space<vmem>>, vector<32x128xf32>
    %cst = arith.constant dense<0.000000e+00> : vector<16x128xf32>
    %5 = tpu.matmul %3, %4, %cst {dimension_numbers = #tpu.dot_dimension_numbers<[1], [0], [0], [1], [0, 0, 1, 1], [], []>} : vector<16x32xf32>, vector<32x128xf32>, vector<16x128xf32> -> vector<16x128xf32>
    %c0_4 = arith.constant 0 : index
    %c0_5 = arith.constant 0 : index
    %6 = vector.load %arg6[%c0_4, %c0_5] : memref<1x128xf32, #tpu.memory_space<vmem>>, vector<1x128xf32>
    %7 = vector.broadcast %6 : vector<1x128xf32> to vector<16x128xf32>
    %8 = arith.addf %5, %7 : vector<16x128xf32>
    %cst_6 = arith.constant 5.000000e-01 : f32
    %9 = vector.broadcast %cst_6 : f32 to vector<16x128xf32>
    %10 = arith.mulf %9, %8 : vector<16x128xf32>
    %cst_7 = arith.constant 0.707106769 : f32
    %11 = vector.broadcast %cst_7 : f32 to vector<16x128xf32>
    %12 = arith.mulf %8, %11 : vector<16x128xf32>
    %cst_8 = arith.constant 0.000000e+00 : f32
    %13 = vector.broadcast %cst_8 : f32 to vector<16x128xf32>
    %14 = arith.cmpf olt, %12, %13 : vector<16x128xf32>
    %cst_9 = arith.constant -1.000000e+00 : f32
    %cst_10 = arith.constant 1.000000e+00 : f32
    %15 = vector.broadcast %cst_9 : f32 to vector<16x128xf32>
    %16 = vector.broadcast %cst_10 : f32 to vector<16x128xf32>
    %17 = arith.select %14, %15, %16 : vector<16x128xi1>, vector<16x128xf32>
    %18 = math.absf %12 : vector<16x128xf32>
    %cst_11 = arith.constant 0.327591091 : f32
    %19 = vector.broadcast %cst_11 : f32 to vector<16x128xf32>
    %20 = arith.mulf %19, %18 : vector<16x128xf32>
    %cst_12 = arith.constant 1.000000e+00 : f32
    %21 = vector.broadcast %cst_12 : f32 to vector<16x128xf32>
    %22 = arith.addf %21, %20 : vector<16x128xf32>
    %cst_13 = arith.constant 1.000000e+00 : f32
    %23 = vector.broadcast %cst_13 : f32 to vector<16x128xf32>
    %24 = arith.divf %23, %22 : vector<16x128xf32>
    %cst_14 = arith.constant 1.06140542 : f32
    %25 = vector.broadcast %cst_14 : f32 to vector<16x128xf32>
    %26 = arith.mulf %25, %24 : vector<16x128xf32>
    %cst_15 = arith.constant -1.45315206 : f32
    %27 = vector.broadcast %cst_15 : f32 to vector<16x128xf32>
    %28 = arith.addf %26, %27 : vector<16x128xf32>
    %29 = arith.mulf %28, %24 : vector<16x128xf32>
    %cst_16 = arith.constant 1.42141378 : f32
    %30 = vector.broadcast %cst_16 : f32 to vector<16x128xf32>
    %31 = arith.addf %29, %30 : vector<16x128xf32>
    %32 = arith.mulf %31, %24 : vector<16x128xf32>
    %cst_17 = arith.constant -0.284496725 : f32
    %33 = vector.broadcast %cst_17 : f32 to vector<16x128xf32>
    %34 = arith.addf %32, %33 : vector<16x128xf32>
    %35 = arith.mulf %34, %24 : vector<16x128xf32>
    %cst_18 = arith.constant 0.254829586 : f32
    %36 = vector.broadcast %cst_18 : f32 to vector<16x128xf32>
    %37 = arith.addf %35, %36 : vector<16x128xf32>
    %38 = arith.mulf %37, %24 : vector<16x128xf32>
    %cst_19 = arith.constant 0.000000e+00 : f32
    %39 = vector.broadcast %cst_19 : f32 to vector<16x128xf32>
    %40 = arith.subf %39, %18 : vector<16x128xf32>
    %41 = arith.mulf %40, %18 : vector<16x128xf32>
    %42 = math.exp %41 : vector<16x128xf32>
    %43 = arith.mulf %38, %42 : vector<16x128xf32>
    %cst_20 = arith.constant 1.000000e+00 : f32
    %44 = vector.broadcast %cst_20 : f32 to vector<16x128xf32>
    %45 = arith.subf %44, %43 : vector<16x128xf32>
    %46 = arith.mulf %17, %45 : vector<16x128xf32>
    %cst_21 = arith.constant 1.000000e+00 : f32
    %47 = vector.broadcast %cst_21 : f32 to vector<16x128xf32>
    %48 = arith.addf %47, %46 : vector<16x128xf32>
    %49 = arith.mulf %10, %48 : vector<16x128xf32>
    %c0_22 = arith.constant 0 : index
    %c0_23 = arith.constant 0 : index
    %50 = vector.load %arg11[%c0_22, %c0_23] : memref<16x32xf32, #tpu.memory_space<vmem>>, vector<16x32xf32>
    %c0_24 = arith.constant 0 : index
    %c0_25 = arith.constant 0 : index
    %51 = vector.load %arg7[%c0_24, %c0_25] : memref<128x32xf32, #tpu.memory_space<vmem>>, vector<128x32xf32>
    %cst_26 = arith.constant dense<0.000000e+00> : vector<16x32xf32>
    %52 = tpu.matmul %49, %51, %cst_26 {dimension_numbers = #tpu.dot_dimension_numbers<[1], [0], [0], [1], [0, 0, 1, 1], [], []>} : vector<16x128xf32>, vector<128x32xf32>, vector<16x32xf32> -> vector<16x32xf32>
    %53 = arith.addf %50, %52 : vector<16x32xf32>
    %c0_27 = arith.constant 0 : index
    %c0_28 = arith.constant 0 : index
    %54 = vector.load %arg11[%c0_27, %c0_28] : memref<16x32xf32, #tpu.memory_space<vmem>>, vector<16x32xf32>
    tpu.vector_store %arg11[%c0_27, %c0_28], %53 {strides = array<i32>} : memref<16x32xf32, #tpu.memory_space<vmem>>, vector<16x32xf32>,
    %c0_i32_29 = arith.constant 0 : i32
    %55 = arith.cmpi eq, %arg1, %c0_i32_29 : i32
    %56 = arith.extui %55 : i1 to i32
    %c0_i32_30 = arith.constant 0 : i32
    %57 = arith.cmpi ne, %56, %c0_i32_30 : i32
    scf.if %57 {
      %c0_31 = arith.constant 0 : index
      %c0_32 = arith.constant 0 : index
      %58 = vector.load %arg11[%c0_31, %c0_32] : memref<16x32xf32, #tpu.memory_space<vmem>>, vector<16x32xf32>
      %c0_33 = arith.constant 0 : index
      %c0_34 = arith.constant 0 : index
      %59 = vector.load %arg9[%c0_33, %c0_34] : memref<16x32xf32, #tpu.memory_space<vmem>>, vector<16x32xf32>
      tpu.vector_store %arg9[%c0_33, %c0_34], %58 {strides = array<i32>} : memref<16x32xf32, #tpu.memory_space<vmem>>, vector<16x32xf32>,
    } else {
    }
    return
  }
  func.func @transform_0(%arg0: i32, %arg1: i32) -> (i32, i32) {
    %c0_i32 = arith.constant 0 : i32
    %c0_i32_0 = arith.constant 0 : i32
    return %arg0, %c0_i32 : i32, i32
  }
  func.func @transform_1(%arg0: i32, %arg1: i32) -> (i32, i32) {
    %c0_i32 = arith.constant 0 : i32
    %c0_i32_0 = arith.constant 0 : i32
    %c0_i32_1 = arith.constant 0 : i32
    return %c0_i32, %c0_i32_0 : i32, i32
  }
  func.func @transform_2(%arg0: i32, %arg1: i32) -> (i32, i32) {
    %c0_i32 = arith.constant 0 : i32
    %c0_i32_0 = arith.constant 0 : i32
    %c0_i32_1 = arith.constant 0 : i32
    return %c0_i32, %c0_i32_0 : i32, i32
  }
  func.func @transform_3(%arg0: i32, %arg1: i32) -> (i32, i32) {
    %c0_i32 = arith.constant 0 : i32
    %c0_i32_0 = arith.constant 0 : i32
    return %c0_i32, %arg1 : i32, i32
  }
  func.func @transform_4(%arg0: i32, %arg1: i32) -> (i32, i32) {
    %c0_i32 = arith.constant 0 : i32
    %c0_i32_0 = arith.constant 0 : i32
    return %c0_i32, %arg1 : i32, i32
  }
  func.func @transform_5(%arg0: i32, %arg1: i32) -> (i32, i32) {
    %c0_i32 = arith.constant 0 : i32
    %c0_i32_0 = arith.constant 0 : i32
    return %arg1, %c0_i32 : i32, i32
  }
  func.func @transform_6(%arg0: i32, %arg1: i32) -> (i32, i32) {
    %c0_i32 = arith.constant 0 : i32
    %c0_i32_0 = arith.constant 0 : i32
    %c0_i32_1 = arith.constant 0 : i32
    return %c0_i32, %c0_i32_0 : i32, i32
  }
  func.func @transform_7(%arg0: i32, %arg1: i32) -> (i32, i32) {
    %c0_i32 = arith.constant 0 : i32
    %c0_i32_0 = arith.constant 0 : i32
    return %arg0, %c0_i32 : i32, i32
  }
}

module attributes {stable_mosaic.version = 11 : i64} {
  func.func @_ffn_kernel(%arg0: i32, %arg1: i32, %arg2: memref<16x32xf32, #tpu.memory_space<vmem>>, %arg3: memref<1x32xf32, #tpu.memory_space<vmem>>, %arg4: memref<1x32xf32, #tpu.memory_space<vmem>>, %arg5: memref<32x128xf32, #tpu.memory_space<vmem>>, %arg6: memref<1x128xf32, #tpu.memory_space<vmem>>, %arg7: memref<128x32xf32, #tpu.memory_space<vmem>>, %arg8: memref<1x32xf32, #tpu.memory_space<vmem>>, %arg9: memref<16x32xf32, #tpu.memory_space<vmem>>, %arg10: memref<16x32xf32, #tpu.memory_space<vmem>>, %arg11: memref<16x32xf32, #tpu.memory_space<vmem>>) attributes {dimension_semantics = [#tpu.dimension_semantics<parallel>, #tpu.dimension_semantics<arbitrary>], iteration_bounds = array<i64: 1, 1>, scalar_prefetch = 0 : i64, scratch_operands = 2 : i64, tpu.core_type = #tpu.core_type<tc>, window_params = [{transform_indices = @transform_0, window_bounds = array<i64: 16, 32>}, {pipeline_mode = #tpu.pipeline_mode<synchronous>, transform_indices = @transform_1, window_bounds = array<i64: 1, 32>}, {pipeline_mode = #tpu.pipeline_mode<synchronous>, transform_indices = @transform_2, window_bounds = array<i64: 1, 32>}, {transform_indices = @transform_3, window_bounds = array<i64: 32, 128>}, {transform_indices = @transform_4, window_bounds = array<i64: 1, 128>}, {transform_indices = @transform_5, window_bounds = array<i64: 128, 32>}, {pipeline_mode = #tpu.pipeline_mode<synchronous>, transform_indices = @transform_6, window_bounds = array<i64: 1, 32>}, {transform_indices = @transform_7, window_bounds = array<i64: 16, 32>}]} {
    %c0_i32 = arith.constant 0 : i32
    %0 = arith.cmpi eq, %arg1, %c0_i32 : i32
    %1 = arith.extui %0 : i1 to i32
    %c0_i32_0 = arith.constant 0 : i32
    %2 = arith.cmpi ne, %1, %c0_i32_0 : i32
    scf.if %2 {
      %c0_31 = arith.constant 0 : index
      %c0_32 = arith.constant 0 : index
      %58 = vector.load %arg2[%c0_31, %c0_32] : memref<16x32xf32, #tpu.memory_space<vmem>>, vector<16x32xf32>
      %c0_33 = arith.constant 0 : index
      %c0_34 = arith.constant 0 : index
      %59 = vector.load %arg3[%c0_33, %c0_34] : memref<1x32xf32, #tpu.memory_space<vmem>>, vector<1x32xf32>
      %c0_35 = arith.constant 0 : index
      %c0_36 = arith.constant 0 : index
      %60 = vector.load %arg4[%c0_35, %c0_36] : memref<1x32xf32, #tpu.memory_space<vmem>>, vector<1x32xf32>
      %cst_37 = arith.constant dense<0.000000e+00> : vector<16xf32>
      %61 = vector.multi_reduction <add>, %58, %cst_37 [1] : vector<16x32xf32> to vector<16xf32>
      %62 = vector.shape_cast %61 : vector<16xf32> to vector<16x1xf32>
      %cst_38 = arith.constant 3.125000e-02 : f32
      %63 = vector.broadcast %cst_38 : f32 to vector<16x1xf32>
      %64 = arith.mulf %62, %63 : vector<16x1xf32>
      %65 = vector.broadcast %64 : vector<16x1xf32> to vector<16x32xf32>
      %66 = arith.subf %58, %65 : vector<16x32xf32>
      %67 = arith.mulf %66, %66 : vector<16x32xf32>
      %cst_39 = arith.constant dense<0.000000e+00> : vector<16xf32>
      %68 = vector.multi_reduction <add>, %67, %cst_39 [1] : vector<16x32xf32> to vector<16xf32>
      %69 = vector.shape_cast %68 : vector<16xf32> to vector<16x1xf32>
      %cst_40 = arith.constant 3.125000e-02 : f32
      %70 = vector.broadcast %cst_40 : f32 to vector<16x1xf32>
      %71 = arith.mulf %69, %70 : vector<16x1xf32>
      %cst_41 = arith.constant 9.99999974E-6 : f32
      %72 = vector.broadcast %cst_41 : f32 to vector<16x1xf32>
      %73 = arith.addf %71, %72 : vector<16x1xf32>
      %74 = math.rsqrt %73 : vector<16x1xf32>
      %75 = vector.broadcast %74 : vector<16x1xf32> to vector<16x32xf32>
      %76 = arith.mulf %66, %75 : vector<16x32xf32>
      %77 = vector.broadcast %59 : vector<1x32xf32> to vector<16x32xf32>
      %78 = arith.mulf %76, %77 : vector<16x32xf32>
      %79 = vector.broadcast %60 : vector<1x32xf32> to vector<16x32xf32>
      %80 = arith.addf %78, %79 : vector<16x32xf32>
      %c0_42 = arith.constant 0 : index
      %c0_43 = arith.constant 0 : index
      %81 = vector.load %arg10[%c0_42, %c0_43] : memref<16x32xf32, #tpu.memory_space<vmem>>, vector<16x32xf32>
      tpu.vector_store %arg10[%c0_42, %c0_43], %80 {strides = array<i32>} : memref<16x32xf32, #tpu.memory_space<vmem>>, vector<16x32xf32>,
      %c0_44 = arith.constant 0 : index
      %c0_45 = arith.constant 0 : index
      %82 = vector.load %arg8[%c0_44, %c0_45] : memref<1x32xf32, #tpu.memory_space<vmem>>, vector<1x32xf32>
      %83 = vector.broadcast %82 : vector<1x32xf32> to vector<16x32xf32>
      %84 = arith.addf %58, %83 : vector<16x32xf32>
      %c0_46 = arith.constant 0 : index
      %c0_47 = arith.constant 0 : index
      %85 = vector.load %arg11[%c0_46, %c0_47] : memref<16x32xf32, #tpu.memory_space<vmem>>, vector<16x32xf32>
      tpu.vector_store %arg11[%c0_46, %c0_47], %84 {strides = array<i32>} : memref<16x32xf32, #tpu.memory_space<vmem>>, vector<16x32xf32>,
    } else {
    }
    %c0 = arith.constant 0 : index
    %c0_1 = arith.constant 0 : index
    %3 = vector.load %arg10[%c0, %c0_1] : memref<16x32xf32, #tpu.memory_space<vmem>>, vector<16x32xf32>
    %c0_2 = arith.constant 0 : index
    %c0_3 = arith.constant 0 : index
    %4 = vector.load %arg5[%c0_2, %c0_3] : memref<32x128xf32, #tpu.memory_space<vmem>>, vector<32x128xf32>
    %cst = arith.constant dense<0.000000e+00> : vector<16x128xf32>
    %5 = tpu.matmul %3, %4, %cst {dimension_numbers = #tpu.dot_dimension_numbers<[1], [0], [0], [1], [0, 0, 1, 1], [], []>} : vector<16x32xf32>, vector<32x128xf32>, vector<16x128xf32> -> vector<16x128xf32>
    %c0_4 = arith.constant 0 : index
    %c0_5 = arith.constant 0 : index
    %6 = vector.load %arg6[%c0_4, %c0_5] : memref<1x128xf32, #tpu.memory_space<vmem>>, vector<1x128xf32>
    %7 = vector.broadcast %6 : vector<1x128xf32> to vector<16x128xf32>
    %8 = arith.addf %5, %7 : vector<16x128xf32>
    %cst_6 = arith.constant 5.000000e-01 : f32
    %9 = vector.broadcast %cst_6 : f32 to vector<16x128xf32>
    %10 = arith.mulf %9, %8 : vector<16x128xf32>
    %cst_7 = arith.constant 0.707106769 : f32
    %11 = vector.broadcast %cst_7 : f32 to vector<16x128xf32>
    %12 = arith.mulf %8, %11 : vector<16x128xf32>
    %cst_8 = arith.constant 0.000000e+00 : f32
    %13 = vector.broadcast %cst_8 : f32 to vector<16x128xf32>
    %14 = arith.cmpf olt, %12, %13 : vector<16x128xf32>
    %cst_9 = arith.constant -1.000000e+00 : f32
    %cst_10 = arith.constant 1.000000e+00 : f32
    %15 = vector.broadcast %cst_9 : f32 to vector<16x128xf32>
    %16 = vector.broadcast %cst_10 : f32 to vector<16x128xf32>
    %17 = arith.select %14, %15, %16 : vector<16x128xi1>, vector<16x128xf32>
    %18 = math.absf %12 : vector<16x128xf32>
    %cst_11 = arith.constant 0.327591091 : f32
    %19 = vector.broadcast %cst_11 : f32 to vector<16x128xf32>
    %20 = arith.mulf %19, %18 : vector<16x128xf32>
    %cst_12 = arith.constant 1.000000e+00 : f32
    %21 = vector.broadcast %cst_12 : f32 to vector<16x128xf32>
    %22 = arith.addf %21, %20 : vector<16x128xf32>
    %cst_13 = arith.constant 1.000000e+00 : f32
    %23 = vector.broadcast %cst_13 : f32 to vector<16x128xf32>
    %24 = arith.divf %23, %22 : vector<16x128xf32>
    %cst_14 = arith.constant 1.06140542 : f32
    %25 = vector.broadcast %cst_14 : f32 to vector<16x128xf32>
    %26 = arith.mulf %25, %24 : vector<16x128xf32>
    %cst_15 = arith.constant -1.45315206 : f32
    %27 = vector.broadcast %cst_15 : f32 to vector<16x128xf32>
    %28 = arith.addf %26, %27 : vector<16x128xf32>
    %29 = arith.mulf %28, %24 : vector<16x128xf32>
    %cst_16 = arith.constant 1.42141378 : f32
    %30 = vector.broadcast %cst_16 : f32 to vector<16x128xf32>
    %31 = arith.addf %29, %30 : vector<16x128xf32>
    %32 = arith.mulf %31, %24 : vector<16x128xf32>
    %cst_17 = arith.constant -0.284496725 : f32
    %33 = vector.broadcast %cst_17 : f32 to vector<16x128xf32>
    %34 = arith.addf %32, %33 : vector<16x128xf32>
    %35 = arith.mulf %34, %24 : vector<16x128xf32>
    %cst_18 = arith.constant 0.254829586 : f32
    %36 = vector.broadcast %cst_18 : f32 to vector<16x128xf32>
    %37 = arith.addf %35, %36 : vector<16x128xf32>
    %38 = arith.mulf %37, %24 : vector<16x128xf32>
    %cst_19 = arith.constant 0.000000e+00 : f32
    %39 = vector.broadcast %cst_19 : f32 to vector<16x128xf32>
    %40 = arith.subf %39, %18 : vector<16x128xf32>
    %41 = arith.mulf %40, %18 : vector<16x128xf32>
    %42 = math.exp %41 : vector<16x128xf32>
    %43 = arith.mulf %38, %42 : vector<16x128xf32>
    %cst_20 = arith.constant 1.000000e+00 : f32
    %44 = vector.broadcast %cst_20 : f32 to vector<16x128xf32>
    %45 = arith.subf %44, %43 : vector<16x128xf32>
    %46 = arith.mulf %17, %45 : vector<16x128xf32>
    %cst_21 = arith.constant 1.000000e+00 : f32
    %47 = vector.broadcast %cst_21 : f32 to vector<16x128xf32>
    %48 = arith.addf %47, %46 : vector<16x128xf32>
    %49 = arith.mulf %10, %48 : vector<16x128xf32>
    %c0_22 = arith.constant 0 : index
    %c0_23 = arith.constant 0 : index
    %50 = vector.load %arg11[%c0_22, %c0_23] : memref<16x32xf32, #tpu.memory_space<vmem>>, vector<16x32xf32>
    %c0_24 = arith.constant 0 : index
    %c0_25 = arith.constant 0 : index
    %51 = vector.load %arg7[%c0_24, %c0_25] : memref<128x32xf32, #tpu.memory_space<vmem>>, vector<128x32xf32>
    %cst_26 = arith.constant dense<0.000000e+00> : vector<16x32xf32>
    %52 = tpu.matmul %49, %51, %cst_26 {dimension_numbers = #tpu.dot_dimension_numbers<[1], [0], [0], [1], [0, 0, 1, 1], [], []>} : vector<16x128xf32>, vector<128x32xf32>, vector<16x32xf32> -> vector<16x32xf32>
    %53 = arith.addf %50, %52 : vector<16x32xf32>
    %c0_27 = arith.constant 0 : index
    %c0_28 = arith.constant 0 : index
    %54 = vector.load %arg11[%c0_27, %c0_28] : memref<16x32xf32, #tpu.memory_space<vmem>>, vector<16x32xf32>
    tpu.vector_store %arg11[%c0_27, %c0_28], %53 {strides = array<i32>} : memref<16x32xf32, #tpu.memory_space<vmem>>, vector<16x32xf32>,
    %c0_i32_29 = arith.constant 0 : i32
    %55 = arith.cmpi eq, %arg1, %c0_i32_29 : i32
    %56 = arith.extui %55 : i1 to i32
    %c0_i32_30 = arith.constant 0 : i32
    %57 = arith.cmpi ne, %56, %c0_i32_30 : i32
    scf.if %57 {
      %c0_31 = arith.constant 0 : index
      %c0_32 = arith.constant 0 : index
      %58 = vector.load %arg11[%c0_31, %c0_32] : memref<16x32xf32, #tpu.memory_space<vmem>>, vector<16x32xf32>
      %c0_33 = arith.constant 0 : index
      %c0_34 = arith.constant 0 : index
      %59 = vector.load %arg9[%c0_33, %c0_34] : memref<16x32xf32, #tpu.memory_space<vmem>>, vector<16x32xf32>
      tpu.vector_store %arg9[%c0_33, %c0_34], %58 {strides = array<i32>} : memref<16x32xf32, #tpu.memory_space<vmem>>, vector<16x32xf32>,
    } else {
    }
    return
  }
  func.func @transform_0(%arg0: i32, %arg1: i32) -> (i32, i32) {
    %c0_i32 = arith.constant 0 : i32
    %c0_i32_0 = arith.constant 0 : i32
    return %arg0, %c0_i32 : i32, i32
  }
  func.func @transform_1(%arg0: i32, %arg1: i32) -> (i32, i32) {
    %c0_i32 = arith.constant 0 : i32
    %c0_i32_0 = arith.constant 0 : i32
    %c0_i32_1 = arith.constant 0 : i32
    return %c0_i32, %c0_i32_0 : i32, i32
  }
  func.func @transform_2(%arg0: i32, %arg1: i32) -> (i32, i32) {
    %c0_i32 = arith.constant 0 : i32
    %c0_i32_0 = arith.constant 0 : i32
    %c0_i32_1 = arith.constant 0 : i32
    return %c0_i32, %c0_i32_0 : i32, i32
  }
  func.func @transform_3(%arg0: i32, %arg1: i32) -> (i32, i32) {
    %c0_i32 = arith.constant 0 : i32
    %c0_i32_0 = arith.constant 0 : i32
    return %c0_i32, %arg1 : i32, i32
  }
  func.func @transform_4(%arg0: i32, %arg1: i32) -> (i32, i32) {
    %c0_i32 = arith.constant 0 : i32
    %c0_i32_0 = arith.constant 0 : i32
    return %c0_i32, %arg1 : i32, i32
  }
  func.func @transform_5(%arg0: i32, %arg1: i32) -> (i32, i32) {
    %c0_i32 = arith.constant 0 : i32
    %c0_i32_0 = arith.constant 0 : i32
    return %arg1, %c0_i32 : i32, i32
  }
  func.func @transform_6(%arg0: i32, %arg1: i32) -> (i32, i32) {
    %c0_i32 = arith.constant 0 : i32
    %c0_i32_0 = arith.constant 0 : i32
    %c0_i32_1 = arith.constant 0 : i32
    return %c0_i32, %c0_i32_0 : i32, i32
  }
  func.func @transform_7(%arg0: i32, %arg1: i32) -> (i32, i32) {
    %c0_i32 = arith.constant 0 : i32
    %c0_i32_0 = arith.constant 0 : i32
    return %arg0, %c0_i32 : i32, i32
  }
}

</mosaic_0001>

<llo_original>
// kernel: transformer_forward.7
$region0: #{transformer_forward.7}
  #allocation0 [shape = 'u32[]', space=smem, size = 0x4, offset = 0x4, fixed_abs, tag = 'smem constant byte address 0x4 - core index']
  #allocation1 [shape = 'u32[72,128]{1,0:T(1,128)}', space=vmem, size = 0x9000, scoped, tag = 'internal scratch']
  %s0 = inlined_call_operand.vmem [shape: f32[2,8,96], index: 0, kind: input, shape index: {}]
  %s1 = inlined_call_operand.vmem [shape: f32[2,8,32], index: 1, kind: input, shape index: {}]
  %s2 = inlined_call_operand.vmem [shape: f32[2,8,32], index: 2, kind: input, shape index: {}]
  %s3 = inlined_call_operand.vmem [shape: f32[32,32], index: 3, kind: input, shape index: {}]
  %s4 = inlined_call_operand.vmem [shape: f32[1,32], index: 4, kind: input, shape index: {}]
  %s5 = inlined_call_operand.vmem [shape: f32[2,8,32], index: 5, kind: output, shape index: {}]
  %s6 = sld [smem:[#allocation0]]
  $region53: #{transformer_forward.7} parent=0
    _
  %s8 = ssub.s32 1, %s6
  %s9 = scalar_select 0, %s8, %s6
  loop: start=0, step=1, limit=4
  $region2: #{transformer_forward.7} parent=0 // loop_pre_header
    _
  $region3: #{transformer_forward.7} parent=0 // loop_header
    %s11 = sphi 0, %s15
    %p12 = scmp.ge.s32.totalorder %s11, 4
    %s21 = sphi 0, %s23
    %s24 = sphi 0, %s21
    %s25 = sphi 0, %s24
    %s41 = sphi 0, %s25
    %s47 = sphi 0, %s49
    %s50 = sphi 0, %s47
    %s51 = sphi 0, %s50
    %s67 = sphi 0, %s51
    %s73 = sphi 0, %s75
    %s76 = sphi 0, %s73
    %s77 = sphi 0, %s76
    %s93 = sphi 0, %s77
    %s97 = sphi 0, %s97
    %s99 = sphi 0, %s97
    %s100 = sphi 0, %s99
    %s114 = sphi 0, %s100
    %s118 = sphi 0, %s118
    %s120 = sphi 0, %s118
    %s121 = sphi 0, %s120
    %s135 = sphi 0, %s121
    %s141 = sphi 0, %s143
    %s144 = sphi 0, %s141
    %s145 = sphi 0, %s144
    %s161 = sphi 0, %s145
  $region4: #{transformer_forward.7} parent=0 // loop_header_branch
    %14 = sbr.rel (%p12) target = $region8
  $region5: #{transformer_forward.7} parent=0 // loop_body
    %s16 = ssub.s32 %s11, 1
    %s17 = ssub.s32 %s11, 2
    %s18 = sadd.s32 %s11, 1
    %s19 = ssub.s32 %s11, %s18
    %p20 = scmp.eq.s32.totalorder %s19, 0
    %s22 = sadd.s32 %s21, 1
    %s23 = scalar_select %p20, %s21, %s22
    %p26 = pneg %p20
    %p27 = scmp.eq.s32.totalorder %s11, 1
    %p28 = por %p26, %p27
    %p29 = scmp.ne.s32.totalorder %s21, %s24
    %p30 = scmp.eq.s32.totalorder %s11, 0
    %p31 = por %p29, %p30
    %p32 = scmp.ne.s32.totalorder %s21, %s24
    %p33 = scmp.eq.s32.totalorder %s16, 1
    %p34 = por %p32, %p33
    %p35 = scmp.ne.s32.totalorder %s24, %s25
    %p36 = scmp.eq.s32.totalorder %s16, 0
    %p37 = por %p35, %p36
    %p38 = scmp.ne.s32.totalorder %s24, %s25
    %p39 = scmp.eq.s32.totalorder %s17, 1
    %p40 = por %p38, %p39
    %p42 = scmp.ne.s32.totalorder %s25, %s41
    %p43 = scmp.eq.s32.totalorder %s17, 0
    %p44 = por %p42, %p43
    %s45 = ssub.s32 %s11, %s18
    %p46 = scmp.eq.s32.totalorder %s45, 0
    %s48 = sadd.s32 %s47, 1
    %s49 = scalar_select %p46, %s47, %s48
    %p52 = pneg %p46
    %p53 = scmp.eq.s32.totalorder %s11, 1
    %p54 = por %p52, %p53
    %p55 = scmp.ne.s32.totalorder %s47, %s50
    %p56 = scmp.eq.s32.totalorder %s11, 0
    %p57 = por %p55, %p56
    %p58 = scmp.ne.s32.totalorder %s47, %s50
    %p59 = scmp.eq.s32.totalorder %s16, 1
    %p60 = por %p58, %p59
    %p61 = scmp.ne.s32.totalorder %s50, %s51
    %p62 = scmp.eq.s32.totalorder %s16, 0
    %p63 = por %p61, %p62
    %p64 = scmp.ne.s32.totalorder %s50, %s51
    %p65 = scmp.eq.s32.totalorder %s17, 1
    %p66 = por %p64, %p65
    %p68 = scmp.ne.s32.totalorder %s51, %s67
    %p69 = scmp.eq.s32.totalorder %s17, 0
    %p70 = por %p68, %p69
    %s71 = ssub.s32 %s11, %s18
    %p72 = scmp.eq.s32.totalorder %s71, 0
    %s74 = sadd.s32 %s73, 1
    %s75 = scalar_select %p72, %s73, %s74
    %p78 = pneg %p72
    %p79 = scmp.eq.s32.totalorder %s11, 1
    %p80 = por %p78, %p79
    %p81 = scmp.ne.s32.totalorder %s73, %s76
    %p82 = scmp.eq.s32.totalorder %s11, 0
    %p83 = por %p81, %p82
    %p84 = scmp.ne.s32.totalorder %s73, %s76
    %p85 = scmp.eq.s32.totalorder %s16, 1
    %p86 = por %p84, %p85
    %p87 = scmp.ne.s32.totalorder %s76, %s77
    %p88 = scmp.eq.s32.totalorder %s16, 0
    %p89 = por %p87, %p88
    %p90 = scmp.ne.s32.totalorder %s76, %s77
    %p91 = scmp.eq.s32.totalorder %s17, 1
    %p92 = por %p90, %p91
    %p94 = scmp.ne.s32.totalorder %s77, %s93
    %p95 = scmp.eq.s32.totalorder %s17, 0
    %p96 = por %p94, %p95
    %s98 = sadd.s32 %s97, 1
    %p101 = scmp.eq.s32.totalorder %s11, 1
    %p102 = scmp.ne.s32.totalorder %s97, %s99
    %p103 = scmp.eq.s32.totalorder %s11, 0
    %p104 = por %p102, %p103
    %p105 = scmp.ne.s32.totalorder %s97, %s99
    %p106 = scmp.eq.s32.totalorder %s16, 1
    %p107 = por %p105, %p106
    %p108 = scmp.ne.s32.totalorder %s99, %s100
    %p109 = scmp.eq.s32.totalorder %s16, 0
    %p110 = por %p108, %p109
    %p111 = scmp.ne.s32.totalorder %s99, %s100
    %p112 = scmp.eq.s32.totalorder %s17, 1
    %p113 = por %p111, %p112
    %p115 = scmp.ne.s32.totalorder %s100, %s114
    %p116 = scmp.eq.s32.totalorder %s17, 0
    %p117 = por %p115, %p116
    %s119 = sadd.s32 %s118, 1
    %p122 = scmp.eq.s32.totalorder %s11, 1
    %p123 = scmp.ne.s32.totalorder %s118, %s120
    %p124 = scmp.eq.s32.totalorder %s11, 0
    %p125 = por %p123, %p124
    %p126 = scmp.ne.s32.totalorder %s118, %s120
    %p127 = scmp.eq.s32.totalorder %s16, 1
    %p128 = por %p126, %p127
    %p129 = scmp.ne.s32.totalorder %s120, %s121
    %p130 = scmp.eq.s32.totalorder %s16, 0
    %p131 = por %p129, %p130
    %p132 = scmp.ne.s32.totalorder %s120, %s121
    %p133 = scmp.eq.s32.totalorder %s17, 1
    %p134 = por %p132, %p133
    %p136 = scmp.ne.s32.totalorder %s121, %s135
    %p137 = scmp.eq.s32.totalorder %s17, 0
    %p138 = por %p136, %p137
    %s139 = ssub.s32 %s11, %s18
    %p140 = scmp.eq.s32.totalorder %s139, 0
    %s142 = sadd.s32 %s141, 1
    %s143 = scalar_select %p140, %s141, %s142
    %p146 = pneg %p140
    %p147 = scmp.eq.s32.totalorder %s11, 1
    %p148 = por %p146, %p147
    %p149 = scmp.ne.s32.totalorder %s141, %s144
    %p150 = scmp.eq.s32.totalorder %s11, 0
    %p151 = por %p149, %p150
    %p152 = scmp.ne.s32.totalorder %s141, %s144
    %p153 = scmp.eq.s32.totalorder %s16, 1
    %p154 = por %p152, %p153
    %p155 = scmp.ne.s32.totalorder %s144, %s145
    %p156 = scmp.eq.s32.totalorder %s16, 0
    %p157 = por %p155, %p156
    %p158 = scmp.ne.s32.totalorder %s144, %s145
    %p159 = scmp.eq.s32.totalorder %s17, 1
    %p160 = por %p158, %p159
    %p162 = scmp.ne.s32.totalorder %s145, %s161
    %p163 = scmp.eq.s32.totalorder %s17, 0
    %p164 = por %p162, %p163
    %p165 = scmp.le.s32.totalorder 1, %s11
    %p166 = scmp.lt.s32.totalorder %s11, 3
    %p167 = pnand %p165, %p166
    %p168 = pneg %p167
    // Predicated region
    $region9: #{transformer_forward.7} parent=5 // pred_check
      _
    $region10: #{transformer_forward.7} parent=5 // pred_check_branch
      %170 = sbr.rel (%p167) target = $region12
    $region11: #{transformer_forward.7} parent=5 // pred_region
      %s171 = ssub.s32 %s11, 1
      // Predicated region
      $region13: #{transformer_forward.7} parent=11 // pred_check
        %p172 = pneg %p110
      $region14: #{transformer_forward.7} parent=11 // pred_check_branch
        %174 = sbr.rel (%p172) target = $region16
      $region15: #{transformer_forward.7} parent=11 // pred_region
        _
      $region16: #{transformer_forward.7} parent=11 // pred_fallthru
        _
      // Predicated region
      $region17: #{transformer_forward.7} parent=11 // pred_check
        %p175 = pneg %p131
      $region18: #{transformer_forward.7} parent=11 // pred_check_branch
        %177 = sbr.rel (%p175) target = $region20
      $region19: #{transformer_forward.7} parent=11 // pred_region
        _
      $region20: #{transformer_forward.7} parent=11 // pred_fallthru
        _
    $region12: #{transformer_forward.7} parent=5 // pred_fallthru
      _
    %p178 = scmp.lt.s32.totalorder %s11, 2
    // Predicated region
    $region21: #{transformer_forward.7} parent=5 // pred_check
      %p179 = pneg %p178
    $region22: #{transformer_forward.7} parent=5 // pred_check_branch
      %181 = sbr.rel (%p179) target = $region24
    $region23: #{transformer_forward.7} parent=5 // pred_region
      // Predicated region
      $region25: #{transformer_forward.7} parent=23 // pred_check
        %p182 = pneg %p31
      $region26: #{transformer_forward.7} parent=23 // pred_check_branch
        %184 = sbr.rel (%p182) target = $region28
      $region27: #{transformer_forward.7} parent=23 // pred_region
        %p185 = scmp.lt.s32.totalorder %s11, 1
        %s186 = scalar_select %p185, %s11, 1
        %s187 = smul.addr %s186, 8
        %s188 = scalar_lea.vmem %s0, %s187
      $region28: #{transformer_forward.7} parent=23 // pred_fallthru
        _
      // Predicated region
      $region29: #{transformer_forward.7} parent=23 // pred_check
        %p189 = pneg %p57
      $region30: #{transformer_forward.7} parent=23 // pred_check_branch
        %191 = sbr.rel (%p189) target = $region32
      $region31: #{transformer_forward.7} parent=23 // pred_region
        %p192 = scmp.lt.s32.totalorder %s11, 1
        %s193 = scalar_select %p192, %s11, 1
        %s194 = smul.addr %s193, 8
        %s195 = scalar_lea.vmem %s1, %s194
      $region32: #{transformer_forward.7} parent=23 // pred_fallthru
        _
      // Predicated region
      $region33: #{transformer_forward.7} parent=23 // pred_check
        %p196 = pneg %p83
      $region34: #{transformer_forward.7} parent=23 // pred_check_branch
        %198 = sbr.rel (%p196) target = $region36
      $region35: #{transformer_forward.7} parent=23 // pred_region
        %p199 = scmp.lt.s32.totalorder %s11, 1
        %s200 = scalar_select %p199, %s11, 1
        %s201 = smul.addr %s200, 8
        %s202 = scalar_lea.vmem %s2, %s201
      $region36: #{transformer_forward.7} parent=23 // pred_fallthru
        _
    $region24: #{transformer_forward.7} parent=5 // pred_fallthru
      _
    %p203 = scmp.le.s32.totalorder 1, %s11
    %p204 = scmp.lt.s32.totalorder %s11, 3
    %p205 = pnand %p203, %p204
    %p206 = pneg %p205
    // Predicated region
    $region37: #{transformer_forward.7} parent=5 // pred_check
      _
    $region38: #{transformer_forward.7} parent=5 // pred_check_branch
      %208 = sbr.rel (%p205) target = $region40
    $region39: #{transformer_forward.7} parent=5 // pred_region
      %s209 = ssub.s32 %s11, 1
      %p210 = scmp.lt.s32.totalorder %s16, 1
      %s211 = scalar_select %p210, %s16, 1
      %s212 = smul.addr %s211, 8
      %s213 = scalar_lea.vmem %s0, %s212
      %p214 = pneg %p37
      %p215 = pneg %p34
      %p216 = scmp.lt.s32.totalorder %s16, 1
      %s217 = scalar_select %p216, %s16, 1
      %s218 = smul.addr %s217, 8
      %s219 = scalar_lea.vmem %s1, %s218
      %p220 = pneg %p63
      %p221 = pneg %p60
      %p222 = scmp.lt.s32.totalorder %s16, 1
      %s223 = scalar_select %p222, %s16, 1
      %s224 = smul.addr %s223, 8
      %s225 = scalar_lea.vmem %s2, %s224
      %p226 = pneg %p89
      %p227 = pneg %p86
      %p228 = pneg %p110
      %p229 = pneg %p107
      %p230 = pneg %p131
      %p231 = pneg %p128
      %p232 = pneg %p157
      %p233 = pneg %p154
      %p234 = scmp.lt.s32.totalorder %s16, 1
      %s235 = scalar_select %p234, %s16, 1
      %s236 = smul.addr %s235, 8
      %s237 = scalar_lea.vmem %s5, %s236
      %p238 = scmp.lt.s32.totalorder %s16, 1
      %s239 = scalar_select %p238, %s16, 1
      %s240 = smul.addr %s239, 8
      %s241 = scalar_lea.vmem %s0, %s240
      %p242 = scmp.lt.s32.totalorder %s16, 1
      %s243 = scalar_select %p242, %s16, 1
      %s244 = smul.addr %s243, 8
      %s245 = scalar_lea.vmem %s1, %s244
      %p246 = scmp.lt.s32.totalorder %s16, 1
      %s247 = scalar_select %p246, %s16, 1
      %s248 = smul.addr %s247, 8
      %s249 = scalar_lea.vmem %s2, %s248
      %p250 = scmp.lt.s32.totalorder %s16, 1
      %s251 = scalar_select %p250, %s16, 1
      %s252 = smul.addr %s251, 8
      %s253 = scalar_lea.vmem %s5, %s252
      %v254 = vld [vmem:[%s241] sm:$0xff]
      %256 = vrot.lane.b32.xlu0 %v254, 96
      %v257 = vpop.permute.xlu0 %256
      %vm258 = vcmask 130048
      %v259 = vsel %vm258, %v254, 0
      %v261 = vsel %vm258, %v257, 0
      %263 = vmatpush.xpose.msra.mxu0 0.0
      %264 = vmatpush.xpose.msra.mxu0 0.0
      %265 = vmatpush.xpose.msra.mxu0 0.0
      %266 = vmatpush.xpose.msra.mxu0 0.0
      %267 = vmatpush.xpose.msra.mxu0 0.0
      %268 = vmatpush.xpose.msra.mxu0 0.0
      %269 = vmatpush.xpose.msra.mxu0 0.0
      %270 = vmatpush.xpose.msra.mxu0 0.0
      %271 = vmatpush.xpose.msra.mxu0 0.0
      %272 = vmatpush.xpose.msra.mxu0 0.0
      %273 = vmatpush.xpose.msra.mxu0 0.0
      %274 = vmatpush.xpose.msra.mxu0 0.0
      %275 = vmatpush.xpose.msra.mxu0 0.0
      %276 = vmatpush.xpose.msra.mxu0 0.0
      %277 = vmatpush.xpose.msra.mxu0 0.0
      %278 = vmatpush.xpose.msra.mxu0 %v261
      %279 = vmatmul.f32.gmra.mxu0 %v259
      %v280 = vpop.f32.mrf.mxu0
      %v281 = vadd.f32 0.0, %v280
      %282 = vdwg.mxu0
      %v283 = vmul.f32 %v281, 0.25
      %vm284 = vcmask 64512
      %v285 = vsel %vm284, %v283, -inf
      %286 = vmax.xlane.f32.xlu0 %v285
      %v287 = vpop.xlane.xlu0 %286
      %v288 = vsub.f32 %v283, %v287
      %v289 = vmul.f32 %v288, 1.442695
      %v290 = vpow.pop %v289
      %v291 = vsel %vm284, %v290, 0.0
      %292 = vadd.xlane.f32.xlu0 %v291
      %v293 = vpop.xlane.xlu0 %292
      %v294 = vrcp.pop %v293
      %v295 = vmul.f32 %v293, %v294
      %v296 = vsub.f32 2.0, %v295
      %v297 = vmul.f32 %v294, %v296
      %298 = vrot.lane.b32.xlu0 %v254, 64
      %v299 = vpop.permute.xlu0 %298
      %v302 = vsel %vm284, %v290, 0
      %304 = vmatpush.msra.mxu0 0.0
      %305 = vmatpush.msra.mxu0 0.0
      %306 = vmatpush.msra.mxu0 0.0
      %307 = vmatpush.msra.mxu0 0.0
      %308 = vmatpush.msra.mxu0 0.0
      %309 = vmatpush.msra.mxu0 0.0
      %310 = vmatpush.msra.mxu0 0.0
      %311 = vmatpush.msra.mxu0 0.0
      %312 = vmatpush.msra.mxu0 0.0
      %313 = vmatpush.msra.mxu0 0.0
      %314 = vmatpush.msra.mxu0 0.0
      %315 = vmatpush.msra.mxu0 0.0
      %316 = vmatpush.msra.mxu0 0.0
      %317 = vmatpush.msra.mxu0 0.0
      %318 = vmatpush.msra.mxu0 0.0
      %319 = vmatpush.msra.mxu0 %v299
      %320 = vmatmul.f32.gmra.mxu0 %v302
      %v321 = vpop.f32.mrf.mxu0
      %v322 = vadd.f32 0.0, %v321
      %323 = vdwg.mxu0
      %v324 = vmul.f32 %v322, %v297
      %325 = vrot.lane.b32.xlu0 %v254, 112
      %v326 = vpop.permute.xlu0 %325
      %327 = vrot.lane.b32.xlu0 %v254, 80
      %v328 = vpop.permute.xlu0 %327
      %v329 = vsel %vm258, %v326, 0
      %v331 = vsel %vm258, %v328, 0
      %333 = vmatpush.xpose.msra.mxu0 0.0
      %334 = vmatpush.xpose.msra.mxu0 0.0
      %335 = vmatpush.xpose.msra.mxu0 0.0
      %336 = vmatpush.xpose.msra.mxu0 0.0
      %337 = vmatpush.xpose.msra.mxu0 0.0
      %338 = vmatpush.xpose.msra.mxu0 0.0
      %339 = vmatpush.xpose.msra.mxu0 0.0
      %340 = vmatpush.xpose.msra.mxu0 0.0
      %341 = vmatpush.xpose.msra.mxu0 0.0
      %342 = vmatpush.xpose.msra.mxu0 0.0
      %343 = vmatpush.xpose.msra.mxu0 0.0
      %344 = vmatpush.xpose.msra.mxu0 0.0
      %345 = vmatpush.xpose.msra.mxu0 0.0
      %346 = vmatpush.xpose.msra.mxu0 0.0
      %347 = vmatpush.xpose.msra.mxu0 0.0
      %348 = vmatpush.xpose.msra.mxu0 %v331
      %349 = vmatmul.f32.gmra.mxu0 %v329
      %v350 = vpop.f32.mrf.mxu0
      %v351 = vadd.f32 0.0, %v350
      %352 = vdwg.mxu0
      %v353 = vmul.f32 %v351, 0.25
      %v354 = vsel %vm284, %v353, -inf
      %355 = vmax.xlane.f32.xlu0 %v354
      %v356 = vpop.xlane.xlu0 %355
      %v357 = vsub.f32 %v353, %v356
      %v358 = vmul.f32 %v357, 1.442695
      %v359 = vpow.pop %v358
      %v360 = vsel %vm284, %v359, 0.0
      %361 = vadd.xlane.f32.xlu0 %v360
      %v362 = vpop.xlane.xlu0 %361
      %v363 = vrcp.pop %v362
      %v364 = vmul.f32 %v362, %v363
      %v365 = vsub.f32 2.0, %v364
      %v366 = vmul.f32 %v363, %v365
      %367 = vrot.lane.b32.xlu0 %v254, 48
      %v368 = vpop.permute.xlu0 %367
      %v371 = vsel %vm284, %v359, 0
      %373 = vmatpush.msra.mxu0 0.0
      %374 = vmatpush.msra.mxu0 0.0
      %375 = vmatpush.msra.mxu0 0.0
      %376 = vmatpush.msra.mxu0 0.0
      %377 = vmatpush.msra.mxu0 0.0
      %378 = vmatpush.msra.mxu0 0.0
      %379 = vmatpush.msra.mxu0 0.0
      %380 = vmatpush.msra.mxu0 0.0
      %381 = vmatpush.msra.mxu0 0.0
      %382 = vmatpush.msra.mxu0 0.0
      %383 = vmatpush.msra.mxu0 0.0
      %384 = vmatpush.msra.mxu0 0.0
      %385 = vmatpush.msra.mxu0 0.0
      %386 = vmatpush.msra.mxu0 0.0
      %387 = vmatpush.msra.mxu0 0.0
      %388 = vmatpush.msra.mxu0 %v368
      %389 = vmatmul.f32.gmra.mxu0 %v371
      %v390 = vpop.f32.mrf.mxu0
      %v391 = vadd.f32 0.0, %v390
      %392 = vdwg.mxu0
      %v393 = vmul.f32 %v391, %v366
      %395 = vrot.lane.b32.xlu0 %v393, 16
      %v396 = vpop.permute.xlu0 %395
      %v398 = vsel %vm258, %v324, %v396
      %v399 = vld [vmem:[%s245] sm:$0xff]
      %v400 = vld [vmem:[%s249] sm:$0xff]
      %v401 = vadd.f32 %v399, %v400
      %v402 = vld [vmem:[%s3] sm:$0xff]
      %v403 = vld [vmem:[%s3 + $0x8] sm:$0xff]
      %v404 = vld [vmem:[%s3 + $0x10] sm:$0xff]
      %v405 = vld [vmem:[%s3 + $0x18] sm:$0xff]
      %v406 = vld [vmem:[%s4] sm:$0x1]
      %v408 = vperm.slane %v406, 0
      %vm410 = vcmask 261120
      %v412 = vsel %vm410, %v398, 0
      %414 = vmatpush.msra.mxu0 0.0
      %415 = vmatpush.msra.mxu0 0.0
      %416 = vmatpush.msra.mxu0 0.0
      %417 = vmatpush.msra.mxu0 0.0
      %418 = vmatpush.msra.mxu0 0.0
      %419 = vmatpush.msra.mxu0 0.0
      %420 = vmatpush.msra.mxu0 0.0
      %421 = vmatpush.msra.mxu0 0.0
      %422 = vmatpush.msra.mxu0 0.0
      %423 = vmatpush.msra.mxu0 0.0
      %424 = vmatpush.msra.mxu0 0.0
      %425 = vmatpush.msra.mxu0 0.0
      %426 = vmatpush.msra.mxu0 %v405
      %427 = vmatpush.msra.mxu0 %v404
      %428 = vmatpush.msra.mxu0 %v403
      %429 = vmatpush.msra.mxu0 %v402
      %430 = vmatmul.f32.gmra.mxu0 %v412
      %v431 = vpop.f32.mrf.mxu0
      %v432 = vadd.f32 %v408, %v431
      %433 = vdwg.mxu0
      %v434 = vadd.f32 %v432, %v401
      %435 = vst.msk [vmem:[%s253] sm:$0xff] %vm410, %v434
      %p436 = scmp.lt.s32.totalorder %s16, 1
      %s437 = scalar_select %p436, %s16, 1
      %s438 = smul.addr %s437, 8
      %s439 = scalar_lea.vmem %s5, %s438
      // Predicated region
      $region41: #{transformer_forward.7} parent=39 // pred_check
        %p440 = pneg %p154
      $region42: #{transformer_forward.7} parent=39 // pred_check_branch
        %442 = sbr.rel (%p440) target = $region44
      $region43: #{transformer_forward.7} parent=39 // pred_region
        _
      $region44: #{transformer_forward.7} parent=39 // pred_fallthru
        _
    $region40: #{transformer_forward.7} parent=5 // pred_fallthru
      _
    %p443 = scmp.le.s32.totalorder 2, %s11
    // Predicated region
    $region45: #{transformer_forward.7} parent=5 // pred_check
      %p444 = pneg %p443
    $region46: #{transformer_forward.7} parent=5 // pred_check_branch
      %446 = sbr.rel (%p444) target = $region48
    $region47: #{transformer_forward.7} parent=5 // pred_region
      %s447 = ssub.s32 %s11, 2
      // Predicated region
      $region49: #{transformer_forward.7} parent=47 // pred_check
        %p448 = pneg %p160
      $region50: #{transformer_forward.7} parent=47 // pred_check_branch
        %450 = sbr.rel (%p448) target = $region52
      $region51: #{transformer_forward.7} parent=47 // pred_region
        %p451 = scmp.lt.s32.totalorder %s17, 1
        %s452 = scalar_select %p451, %s17, 1
        %s453 = smul.addr %s452, 8
        %s454 = scalar_lea.vmem %s5, %s453
      $region52: #{transformer_forward.7} parent=47 // pred_fallthru
        _
    $region48: #{transformer_forward.7} parent=5 // pred_fallthru
      _
  $region6: #{transformer_forward.7} parent=0 // loop_footer
    %s15 = sadd.s32 1, %s11
  $region7: #{transformer_forward.7} parent=0 // loop_footer_branch
    %10 = sbr.rel target = $region3
  $region8: #{transformer_forward.7} parent=0 // loop_exit
    _

// kernel: transformer_forward.6
$region0: #{transformer_forward.6}
  #allocation0 [shape = 'u32[]', space=smem, size = 0x4, offset = 0x4, fixed_abs, tag = 'smem constant byte address 0x4 - core index']
  #allocation1 [shape = 'u32[72,128]{1,0:T(1,128)}', space=vmem, size = 0x9000, scoped, tag = 'internal scratch']
  %s0 = inlined_call_operand.vmem [shape: f32[16,32], index: 0, kind: input, shape index: {}]
  %s1 = inlined_call_operand.vmem [shape: f32[1,32], index: 1, kind: input, shape index: {}]
  %s2 = inlined_call_operand.vmem [shape: f32[1,32], index: 2, kind: input, shape index: {}]
  %s3 = inlined_call_operand.vmem [shape: f32[32,128], index: 3, kind: input, shape index: {}]
  %s4 = inlined_call_operand.vmem [shape: f32[16,128], index: 4, kind: output, shape index: {0}]
  %s5 = inlined_call_operand.vmem [shape: f32[16,32], index: 5, kind: output, shape index: {1}]
  %6 = xla_tuple %s4, %s5
  %s7 = sld [smem:[#allocation0]]
  $region38: #{transformer_forward.6} parent=0
    _
  %s9 = ssub.s32 1, %s7
  %s10 = scalar_select 0, %s9, %s7
  // Predicated region
  $region2: #{transformer_forward.6} parent=0 // pred_check
    _
  $region3: #{transformer_forward.6} parent=0 // pred_check_branch
    %12 = sbr.rel (0) target = $region5
  $region4: #{transformer_forward.6} parent=0 // pred_region
    _
  $region5: #{transformer_forward.6} parent=0 // pred_fallthru
    _
  // Predicated region
  $region6: #{transformer_forward.6} parent=0 // pred_check
    _
  $region7: #{transformer_forward.6} parent=0 // pred_check_branch
    %14 = sbr.rel (0) target = $region9
  $region8: #{transformer_forward.6} parent=0 // pred_region
    _
  $region9: #{transformer_forward.6} parent=0 // pred_fallthru
    _
  // Predicated region
  $region10: #{transformer_forward.6} parent=0 // pred_check
    _
  $region11: #{transformer_forward.6} parent=0 // pred_check_branch
    %16 = sbr.rel (0) target = $region13
  $region12: #{transformer_forward.6} parent=0 // pred_region
    _
  $region13: #{transformer_forward.6} parent=0 // pred_fallthru
    _
  // Predicated region
  $region14: #{transformer_forward.6} parent=0 // pred_check
    _
  $region15: #{transformer_forward.6} parent=0 // pred_check_branch
    %18 = sbr.rel (0) target = $region17
  $region16: #{transformer_forward.6} parent=0 // pred_region
    _
  $region17: #{transformer_forward.6} parent=0 // pred_fallthru
    _
  %p19 = scmp.eq.s32.totalorder 0, 0
  // Predicated region
  $region18: #{transformer_forward.6} parent=0 // pred_check
    %p20 = pneg %p19
  $region19: #{transformer_forward.6} parent=0 // pred_check_branch
    %22 = sbr.rel (%p20) target = $region21
  $region20: #{transformer_forward.6} parent=0 // pred_region
    %v23 = vld [vmem:[%s0] sm:$0xff]
    %v24 = vld [vmem:[%s0 + $0x8] sm:$0xff]
    %v25 = vld [vmem:[%s1] sm:$0x1]
    %v26 = vld [vmem:[%s2] sm:$0x1]
    %vm27 = vcmask 261120
    %v28 = vsel %vm27, %v23, 0.0
    %29 = vadd.xlane.f32.xlu0 %v28
    %v30 = vpop.xlane.xlu0 %29
    %v31 = vsel %vm27, %v24, 0.0
    %32 = vadd.xlane.f32.xlu0 %v31
    %v33 = vpop.xlane.xlu0 %32
    %v34 = vmul.f32 %v30, 0.03125
    %v35 = vmul.f32 %v33, 0.03125
    %v36 = vsub.f32 %v23, %v34
    %v37 = vsub.f32 %v24, %v35
    %v38 = vmul.f32 %v36, %v36
    %v39 = vmul.f32 %v37, %v37
    %v40 = vsel %vm27, %v38, 0.0
    %41 = vadd.xlane.f32.xlu0 %v40
    %v42 = vpop.xlane.xlu0 %41
    %v43 = vsel %vm27, %v39, 0.0
    %44 = vadd.xlane.f32.xlu0 %v43
    %v45 = vpop.xlane.xlu0 %44
    %v46 = vmul.f32 %v42, 0.03125
    %v47 = vmul.f32 %v45, 0.03125
    %v48 = vadd.f32 %v46, 1e-05
    %v49 = vadd.f32 %v47, 1e-05
    %v50 = vrsqrt.pop %v48
    %v51 = vmul.f32 %v50, %v48
    %v52 = vmul.f32 %v51, %v50
    %v53 = vmul.f32 0.5, %v52
    %v54 = vsub.f32 1.5, %v53
    %v55 = vmul.f32 %v50, %v54
    %vm56 = vweird.f32 %v48
    %vm57 = vweird.f32 %v50
    %vm58 = vmor %vm56, %vm57
    %v59 = vsel %vm58, %v50, %v55
    %v60 = vrsqrt.pop %v49
    %v61 = vmul.f32 %v60, %v49
    %v62 = vmul.f32 %v61, %v60
    %v63 = vmul.f32 0.5, %v62
    %v64 = vsub.f32 1.5, %v63
    %v65 = vmul.f32 %v60, %v64
    %vm66 = vweird.f32 %v49
    %vm67 = vweird.f32 %v60
    %vm68 = vmor %vm66, %vm67
    %v69 = vsel %vm68, %v60, %v65
    %v70 = vmul.f32 %v36, %v59
    %v71 = vmul.f32 %v37, %v69
    %v73 = vperm.slane %v25, 0
    %v75 = vmul.f32 %v70, %v73
    %v76 = vmul.f32 %v71, %v73
    %v78 = vperm.slane %v26, 0
    %v80 = vadd.f32 %v75, %v78
    %v81 = vadd.f32 %v76, %v78
    %82 = vst.msk [vmem:[%s5] sm:$0xff] %vm27, %v80
    %83 = vst.msk [vmem:[%s5 + $0x8] sm:$0xff] %vm27, %v81
  $region21: #{transformer_forward.6} parent=0 // pred_fallthru
    _
  %v84 = vld [vmem:[%s5] sm:$0xff]
  %v85 = vld [vmem:[%s5 + $0x8] sm:$0xff]
  %v86 = vld [vmem:[%s3] sm:$0xff]
  %v87 = vld [vmem:[%s3 + $0x8] sm:$0xff]
  %v88 = vld [vmem:[%s3 + $0x10] sm:$0xff]
  %v89 = vld [vmem:[%s3 + $0x18] sm:$0xff]
  %vm90 = vcmask 261120
  %v92 = vsel %vm90, %v84, 0
  %v95 = vsel %vm90, %v85, 0
  %97 = vmatpush.msra.mxu0 0.0
  %98 = vmatpush.msra.mxu0 0.0
  %99 = vmatpush.msra.mxu0 0.0
  %100 = vmatpush.msra.mxu0 0.0
  %101 = vmatpush.msra.mxu0 0.0
  %102 = vmatpush.msra.mxu0 0.0
  %103 = vmatpush.msra.mxu0 0.0
  %104 = vmatpush.msra.mxu0 0.0
  %105 = vmatpush.msra.mxu0 0.0
  %106 = vmatpush.msra.mxu0 0.0
  %107 = vmatpush.msra.mxu0 0.0
  %108 = vmatpush.msra.mxu0 0.0
  %109 = vmatpush.msra.mxu0 %v89
  %110 = vmatpush.msra.mxu0 %v88
  %111 = vmatpush.msra.mxu0 %v87
  %112 = vmatpush.msra.mxu0 %v86
  %113 = vmatmul.f32.gmra.mxu0 %v92
  %v114 = vpop.f32.mrf.mxu0
  %v115 = vadd.f32 0.0, %v114
  %116 = vmatmul.f32.gmra.mxu0 %v95
  %v117 = vpop.f32.mrf.mxu0
  %v118 = vadd.f32 0.0, %v117
  %119 = vdwg.mxu0
  %120 = vst [vmem:[%s4] sm:$0xff] %v115
  %121 = vst [vmem:[%s4 + $0x8] sm:$0xff] %v118
  // Predicated region
  $region22: #{transformer_forward.6} parent=0 // pred_check
    _
  $region23: #{transformer_forward.6} parent=0 // pred_check_branch
    %123 = sbr.rel (0) target = $region25
  $region24: #{transformer_forward.6} parent=0 // pred_region
    _
  $region25: #{transformer_forward.6} parent=0 // pred_fallthru
    _
  // Predicated region
  $region26: #{transformer_forward.6} parent=0 // pred_check
    _
  $region27: #{transformer_forward.6} parent=0 // pred_check_branch
    %125 = sbr.rel (0) target = $region29
  $region28: #{transformer_forward.6} parent=0 // pred_region
    _
  $region29: #{transformer_forward.6} parent=0 // pred_fallthru
    _
  // Predicated region
  $region30: #{transformer_forward.6} parent=0 // pred_check
    _
  $region31: #{transformer_forward.6} parent=0 // pred_check_branch
    %127 = sbr.rel (0) target = $region33
  $region32: #{transformer_forward.6} parent=0 // pred_region
    _
  $region33: #{transformer_forward.6} parent=0 // pred_fallthru
    _
  // Predicated region
  $region34: #{transformer_forward.6} parent=0 // pred_check
    _
  $region35: #{transformer_forward.6} parent=0 // pred_check_branch
    %129 = sbr.rel (0) target = $region37
  $region36: #{transformer_forward.6} parent=0 // pred_region
    _
  $region37: #{transformer_forward.6} parent=0 // pred_fallthru
    _

// kernel: transformer_forward.11
$region0: #{transformer_forward.11}
  #allocation0 [shape = 'u32[]', space=smem, size = 0x4, offset = 0x4, fixed_abs, tag = 'smem constant byte address 0x4 - core index']
  #allocation1 [shape = 'u32[72,128]{1,0:T(1,128)}', space=vmem, size = 0x9000, scoped, tag = 'internal scratch']
  #allocation2 [shape = 'f32[16,32]{1,0:T(8,128)}', space=vmem, size = 0x2000, scoped, tag = 'scratch operand']
  #allocation3 [shape = 'f32[16,32]{1,0:T(8,128)}', space=vmem, size = 0x2000, scoped, tag = 'scratch operand']
  %s0 = inlined_call_operand.vmem [shape: f32[16,32], index: 0, kind: input, shape index: {}]
  %s1 = inlined_call_operand.vmem [shape: f32[1,32], index: 1, kind: input, shape index: {}]
  %s2 = inlined_call_operand.vmem [shape: f32[1,32], index: 2, kind: input, shape index: {}]
  %s3 = inlined_call_operand.vmem [shape: f32[32,128], index: 3, kind: input, shape index: {}]
  %s4 = inlined_call_operand.vmem [shape: f32[1,128], index: 4, kind: input, shape index: {}]
  %s5 = inlined_call_operand.vmem [shape: f32[128,32], index: 5, kind: input, shape index: {}]
  %s6 = inlined_call_operand.vmem [shape: f32[1,32], index: 6, kind: input, shape index: {}]
  %s7 = inlined_call_operand.hbm [shape: f32[16,32], index: 7, kind: output, shape index: {}]
  %s8 = sld [smem:[#allocation0]]
  $region46: #{transformer_forward.11} parent=0
    _
  %s10 = ssub.s32 1, %s8
  %s11 = scalar_select 0, %s10, %s8
  $region1: #{transformer_forward.11} parent=0
    #allocation4 [shape = 'u8[8192]{0}', space=vmem, size = 0x2000, scoped, tag = 'output window, operand 0, single buffered']
    #allocation5 [shape = 's32[1]{0}', space=sflag, size = 0x4, scoped, tag = 'scoped memory for transformer_forward.11']
    %12 = vsyncpa [#allocation5], 0
    // Predicated region
    $region2: #{transformer_forward.11} parent=1 // pred_check
      _
    $region3: #{transformer_forward.11} parent=1 // pred_check_branch
      %14 = sbr.rel (0) target = $region5
    $region4: #{transformer_forward.11} parent=1 // pred_region
      _
    $region5: #{transformer_forward.11} parent=1 // pred_fallthru
      _
    // Predicated region
    $region6: #{transformer_forward.11} parent=1 // pred_check
      _
    $region7: #{transformer_forward.11} parent=1 // pred_check_branch
      %16 = sbr.rel (0) target = $region9
    $region8: #{transformer_forward.11} parent=1 // pred_region
      _
    $region9: #{transformer_forward.11} parent=1 // pred_fallthru
      _
    // Predicated region
    $region10: #{transformer_forward.11} parent=1 // pred_check
      _
    $region11: #{transformer_forward.11} parent=1 // pred_check_branch
      %18 = sbr.rel (0) target = $region13
    $region12: #{transformer_forward.11} parent=1 // pred_region
      _
    $region13: #{transformer_forward.11} parent=1 // pred_fallthru
      _
    // Predicated region
    $region14: #{transformer_forward.11} parent=1 // pred_check
      _
    $region15: #{transformer_forward.11} parent=1 // pred_check_branch
      %20 = sbr.rel (0) target = $region17
    $region16: #{transformer_forward.11} parent=1 // pred_region
      _
    $region17: #{transformer_forward.11} parent=1 // pred_fallthru
      _
    // Predicated region
    $region18: #{transformer_forward.11} parent=1 // pred_check
      _
    $region19: #{transformer_forward.11} parent=1 // pred_check_branch
      %22 = sbr.rel (0) target = $region21
    $region20: #{transformer_forward.11} parent=1 // pred_region
      _
    $region21: #{transformer_forward.11} parent=1 // pred_fallthru
      _
    // Predicated region
    $region22: #{transformer_forward.11} parent=1 // pred_check
      _
    $region23: #{transformer_forward.11} parent=1 // pred_check_branch
      %24 = sbr.rel (0) target = $region25
    $region24: #{transformer_forward.11} parent=1 // pred_region
      _
    $region25: #{transformer_forward.11} parent=1 // pred_fallthru
      _
    // Predicated region
    $region26: #{transformer_forward.11} parent=1 // pred_check
      _
    $region27: #{transformer_forward.11} parent=1 // pred_check_branch
      %26 = sbr.rel (0) target = $region29
    $region28: #{transformer_forward.11} parent=1 // pred_region
      _
    $region29: #{transformer_forward.11} parent=1 // pred_fallthru
      _
    %p27 = scmp.eq.s32.totalorder 0, 0
    // Predicated region
    $region30: #{transformer_forward.11} parent=1 // pred_check
      %p28 = pneg %p27
    $region31: #{transformer_forward.11} parent=1 // pred_check_branch
      %30 = sbr.rel (%p28) target = $region33
    $region32: #{transformer_forward.11} parent=1 // pred_region
      %v31 = vld [vmem:[%s0] sm:$0xff]
      %v32 = vld [vmem:[%s0 + $0x8] sm:$0xff]
      %v33 = vld [vmem:[%s1] sm:$0x1]
      %v34 = vld [vmem:[%s2] sm:$0x1]
      %vm35 = vcmask 261120
      %v36 = vsel %vm35, %v31, 0.0
      %37 = vadd.xlane.f32.xlu0 %v36
      %v38 = vpop.xlane.xlu0 %37
      %v39 = vsel %vm35, %v32, 0.0
      %40 = vadd.xlane.f32.xlu0 %v39
      %v41 = vpop.xlane.xlu0 %40
      %v42 = vmul.f32 %v38, 0.03125
      %v43 = vmul.f32 %v41, 0.03125
      %v44 = vsub.f32 %v31, %v42
      %v45 = vsub.f32 %v32, %v43
      %v46 = vmul.f32 %v44, %v44
      %v47 = vmul.f32 %v45, %v45
      %v48 = vsel %vm35, %v46, 0.0
      %49 = vadd.xlane.f32.xlu0 %v48
      %v50 = vpop.xlane.xlu0 %49
      %v51 = vsel %vm35, %v47, 0.0
      %52 = vadd.xlane.f32.xlu0 %v51
      %v53 = vpop.xlane.xlu0 %52
      %v54 = vmul.f32 %v50, 0.03125
      %v55 = vmul.f32 %v53, 0.03125
      %v56 = vadd.f32 %v54, 1e-05
      %v57 = vadd.f32 %v55, 1e-05
      %v58 = vrsqrt.pop %v56
      %v59 = vmul.f32 %v58, %v56
      %v60 = vmul.f32 %v59, %v58
      %v61 = vmul.f32 0.5, %v60
      %v62 = vsub.f32 1.5, %v61
      %v63 = vmul.f32 %v58, %v62
      %vm64 = vweird.f32 %v56
      %vm65 = vweird.f32 %v58
      %vm66 = vmor %vm64, %vm65
      %v67 = vsel %vm66, %v58, %v63
      %v68 = vrsqrt.pop %v57
      %v69 = vmul.f32 %v68, %v57
      %v70 = vmul.f32 %v69, %v68
      %v71 = vmul.f32 0.5, %v70
      %v72 = vsub.f32 1.5, %v71
      %v73 = vmul.f32 %v68, %v72
      %vm74 = vweird.f32 %v57
      %vm75 = vweird.f32 %v68
      %vm76 = vmor %vm74, %vm75
      %v77 = vsel %vm76, %v68, %v73
      %v78 = vmul.f32 %v44, %v67
      %v79 = vmul.f32 %v45, %v77
      %v81 = vperm.slane %v33, 0
      %v83 = vmul.f32 %v78, %v81
      %v84 = vmul.f32 %v79, %v81
      %v86 = vperm.slane %v34, 0
      %v88 = vadd.f32 %v83, %v86
      %v89 = vadd.f32 %v84, %v86
      %90 = vst.msk [vmem:[#allocation2] sm:$0xff] %vm35, %v88
      %91 = vst.msk [vmem:[#allocation2 + $0x8] sm:$0xff] %vm35, %v89
      %v92 = vld [vmem:[%s6] sm:$0x1]
      %v94 = vperm.slane %v92, 0
      %v96 = vadd.f32 %v31, %v94
      %v97 = vadd.f32 %v32, %v94
      %98 = vst.msk [vmem:[#allocation3] sm:$0xff] %vm35, %v96
      %99 = vst.msk [vmem:[#allocation3 + $0x8] sm:$0xff] %vm35, %v97
    $region33: #{transformer_forward.11} parent=1 // pred_fallthru
      _
    %v100 = vld [vmem:[#allocation2] sm:$0xff]
    %v101 = vld [vmem:[#allocation2 + $0x8] sm:$0xff]
    %v102 = vld [vmem:[%s3] sm:$0xff]
    %v103 = vld [vmem:[%s3 + $0x8] sm:$0xff]
    %v104 = vld [vmem:[%s3 + $0x10] sm:$0xff]
    %v105 = vld [vmem:[%s3 + $0x18] sm:$0xff]
    %v106 = vld [vmem:[%s4] sm:$0x1]
    %v108 = vperm.slane %v106, 0
    %vm110 = vcmask 261120
    %v112 = vsel %vm110, %v100, 0
    %v115 = vsel %vm110, %v101, 0
    %117 = vmatpush.msra.mxu0 0.0
    %118 = vmatpush.msra.mxu0 0.0
    %119 = vmatpush.msra.mxu0 0.0
    %120 = vmatpush.msra.mxu0 0.0
    %121 = vmatpush.msra.mxu0 0.0
    %122 = vmatpush.msra.mxu0 0.0
    %123 = vmatpush.msra.mxu0 0.0
    %124 = vmatpush.msra.mxu0 0.0
    %125 = vmatpush.msra.mxu0 0.0
    %126 = vmatpush.msra.mxu0 0.0
    %127 = vmatpush.msra.mxu0 0.0
    %128 = vmatpush.msra.mxu0 0.0
    %129 = vmatpush.msra.mxu0 %v105
    %130 = vmatpush.msra.mxu0 %v104
    %131 = vmatpush.msra.mxu0 %v103
    %132 = vmatpush.msra.mxu0 %v102
    %133 = vmatmul.f32.gmra.mxu0 %v112
    %v134 = vpop.f32.mrf.mxu0
    %v135 = vadd.f32 %v108, %v134
    %136 = vmatmul.f32.gmra.mxu0 %v115
    %v137 = vpop.f32.mrf.mxu0
    %v138 = vadd.f32 %v108, %v137
    %139 = vdwg.mxu0
    %v140 = vmul.f32 %v135, 0.5
    %v141 = vmul.f32 %v138, 0.5
    %v142 = vmul.f32 %v135, 0.70710677
    %v143 = vmul.f32 %v138, 0.70710677
    %vm144 = vcmp.lt.f32.partialorder %v142, 0.0
    %vm145 = vcmp.lt.f32.partialorder %v143, 0.0
    %v146 = vsel %vm144, -1.0, 1.0
    %v147 = vsel %vm145, -1.0, 1.0
    %v148 = vand.u32 2147483647, %v142
    %v149 = vand.u32 2147483647, %v143
    %v150 = vmul.f32 %v148, 0.3275911
    %v151 = vmul.f32 %v149, 0.3275911
    %v152 = vadd.f32 %v150, 1.0
    %v153 = vadd.f32 %v151, 1.0
    %v154 = vrcp.pop %v152
    %v155 = vmul.f32 %v152, %v154
    %v156 = vsub.f32 1.0, %v155
    %v157 = vmul.f32 %v154, %v156
    %v158 = vadd.f32 %v154, %v157
    %vm159 = vweird.f32 %v152
    %vm160 = vweird.f32 %v154
    %vm161 = vmor %vm159, %vm160
    %v162 = vsel %vm161, %v154, %v158
    %v163 = vand.u32 2147483647, %v152
    %vm164 = vcmp.eq.f32.partialorder %v163, 8.507059e+37
    %v165 = vand.u32 %v152, 2147483648
    %v166 = vor.u32 1.1754944e-38, %v165
    %v167 = vsel %vm164, %v166, %v162
    %v168 = vmul.f32 1.0, %v167
    %v169 = vrcp.pop %v153
    %v170 = vmul.f32 %v153, %v169
    %v171 = vsub.f32 1.0, %v170
    %v172 = vmul.f32 %v169, %v171
    %v173 = vadd.f32 %v169, %v172
    %vm174 = vweird.f32 %v153
    %vm175 = vweird.f32 %v169
    %vm176 = vmor %vm174, %vm175
    %v177 = vsel %vm176, %v169, %v173
    %v178 = vand.u32 2147483647, %v153
    %vm179 = vcmp.eq.f32.partialorder %v178, 8.507059e+37
    %v180 = vand.u32 %v153, 2147483648
    %v181 = vor.u32 1.1754944e-38, %v180
    %v182 = vsel %vm179, %v181, %v177
    %v183 = vmul.f32 1.0, %v182
    %v184 = vmul.f32 %v168, 1.0614054
    %v185 = vmul.f32 %v183, 1.0614054
    %v186 = vadd.f32 %v184, -1.4531521
    %v187 = vadd.f32 %v185, -1.4531521
    %v188 = vmul.f32 %v186, %v168
    %v189 = vmul.f32 %v187, %v183
    %v190 = vadd.f32 %v188, 1.4214138
    %v191 = vadd.f32 %v189, 1.4214138
    %v192 = vmul.f32 %v190, %v168
    %v193 = vmul.f32 %v191, %v183
    %v194 = vadd.f32 %v192, -0.28449672
    %v195 = vadd.f32 %v193, -0.28449672
    %v196 = vmul.f32 %v194, %v168
    %v197 = vmul.f32 %v195, %v183
    %v198 = vadd.f32 %v196, 0.2548296
    %v199 = vadd.f32 %v197, 0.2548296
    %v200 = vmul.f32 %v198, %v168
    %v201 = vmul.f32 %v199, %v183
    %v202 = vsub.f32 0.0, %v148
    %v203 = vsub.f32 0.0, %v149
    %v204 = vmul.f32 %v202, %v148
    %v205 = vmul.f32 %v203, %v149
    %v206 = vmul.f32 %v204, 1.442695
    %v207 = vpow.pop %v206
    %v208 = vmul.f32 %v205, 1.442695
    %v209 = vpow.pop %v208
    %v210 = vmul.f32 %v200, %v207
    %v211 = vmul.f32 %v201, %v209
    %v212 = vsub.f32 1.0, %v210
    %v213 = vsub.f32 1.0, %v211
    %v214 = vmul.f32 %v146, %v212
    %v215 = vmul.f32 %v147, %v213
    %v216 = vadd.f32 %v214, 1.0
    %v217 = vadd.f32 %v215, 1.0
    %v218 = vmul.f32 %v140, %v216
    %v219 = vmul.f32 %v141, %v217
    %v220 = vld [vmem:[#allocation3] sm:$0xff]
    %v221 = vld [vmem:[#allocation3 + $0x8] sm:$0xff]
    %v222 = vld [vmem:[%s5] sm:$0xff]
    %v223 = vld [vmem:[%s5 + $0x8] sm:$0xff]
    %v224 = vld [vmem:[%s5 + $0x10] sm:$0xff]
    %v225 = vld [vmem:[%s5 + $0x18] sm:$0xff]
    %v226 = vld [vmem:[%s5 + $0x20] sm:$0xff]
    %v227 = vld [vmem:[%s5 + $0x28] sm:$0xff]
    %v228 = vld [vmem:[%s5 + $0x30] sm:$0xff]
    %v229 = vld [vmem:[%s5 + $0x38] sm:$0xff]
    %v230 = vld [vmem:[%s5 + $0x40] sm:$0xff]
    %v231 = vld [vmem:[%s5 + $0x48] sm:$0xff]
    %v232 = vld [vmem:[%s5 + $0x50] sm:$0xff]
    %v233 = vld [vmem:[%s5 + $0x58] sm:$0xff]
    %v234 = vld [vmem:[%s5 + $0x60] sm:$0xff]
    %v235 = vld [vmem:[%s5 + $0x68] sm:$0xff]
    %v236 = vld [vmem:[%s5 + $0x70] sm:$0xff]
    %v237 = vld [vmem:[%s5 + $0x78] sm:$0xff]
    %238 = vmatpush.msra.mxu0 %v237
    %239 = vmatpush.msra.mxu0 %v236
    %240 = vmatpush.msra.mxu0 %v235
    %241 = vmatpush.msra.mxu0 %v234
    %242 = vmatpush.msra.mxu0 %v233
    %243 = vmatpush.msra.mxu0 %v232
    %244 = vmatpush.msra.mxu0 %v231
    %245 = vmatpush.msra.mxu0 %v230
    %246 = vmatpush.msra.mxu0 %v229
    %247 = vmatpush.msra.mxu0 %v228
    %248 = vmatpush.msra.mxu0 %v227
    %249 = vmatpush.msra.mxu0 %v226
    %250 = vmatpush.msra.mxu0 %v225
    %251 = vmatpush.msra.mxu0 %v224
    %252 = vmatpush.msra.mxu0 %v223
    %253 = vmatpush.msra.mxu0 %v222
    %254 = vmatmul.f32.gmra.mxu0 %v218
    %v255 = vpop.f32.mrf.mxu0
    %v256 = vadd.f32 0.0, %v255
    %257 = vmatmul.f32.gmra.mxu0 %v219
    %v258 = vpop.f32.mrf.mxu0
    %v259 = vadd.f32 0.0, %v258
    %260 = vdwg.mxu0
    %v261 = vadd.f32 %v220, %v256
    %v262 = vadd.f32 %v221, %v259
    %263 = vst.msk [vmem:[#allocation3] sm:$0xff] %vm110, %v261
    %264 = vst.msk [vmem:[#allocation3 + $0x8] sm:$0xff] %vm110, %v262
    // Predicated region
    $region34: #{transformer_forward.11} parent=1 // pred_check
      %p265 = pneg %p27
    $region35: #{transformer_forward.11} parent=1 // pred_check_branch
      %267 = sbr.rel (%p265) target = $region37
    $region36: #{transformer_forward.11} parent=1 // pred_region
      %v268 = vld [vmem:[#allocation3] sm:$0xff]
      %v269 = vld [vmem:[#allocation3 + $0x8] sm:$0xff]
      %270 = vst.msk [vmem:[#allocation4] sm:$0xff] %vm110, %v268
      %271 = vst.msk [vmem:[#allocation4 + $0x8] sm:$0xff] %vm110, %v269
    $region37: #{transformer_forward.11} parent=1 // pred_fallthru
      _
    // Predicated region
    $region38: #{transformer_forward.11} parent=1 // pred_check
      _
    $region39: #{transformer_forward.11} parent=1 // pred_check_branch
      %273 = sbr.rel (0) target = $region41
    $region40: #{transformer_forward.11} parent=1 // pred_region
      %275 = vsyncadd [#allocation5], 0
      %s276 = sshll.u32 [#allocation4], 4
      %s277 = int_to_ptr.vmem [resolvable:$true] %s276
      %s278 = sshll.u32 %s7, 4
      %s279 = int_to_ptr.hbm [resolvable:$true] %s278
      %284 = dma.vmem_to_hbm [thread:$0]  %s277, 256, %s279, [#allocation5], 128, 128, 8
    $region41: #{transformer_forward.11} parent=1 // pred_fallthru
      _
    // Predicated region
    $region42: #{transformer_forward.11} parent=1 // pred_check
      _
    $region43: #{transformer_forward.11} parent=1 // pred_check_branch
      %286 = sbr.rel (0) target = $region45
    $region44: #{transformer_forward.11} parent=1 // pred_region
      %288 = dma.done [#allocation5], 256
    $region45: #{transformer_forward.11} parent=1 // pred_fallthru
      _
    %289 = vsyncpa [#allocation5], 1

// kernel: transformer_forward.8
$region0: #{transformer_forward.8}
  #allocation0 [shape = 'u32[]', space=smem, size = 0x4, offset = 0x4, fixed_abs, tag = 'smem constant byte address 0x4 - core index']
  #allocation1 [shape = 'u32[72,128]{1,0:T(1,128)}', space=vmem, size = 0x9000, scoped, tag = 'internal scratch']
  #allocation2 [shape = 'f32[16,32]{1,0:T(8,128)}', space=vmem, size = 0x2000, scoped, tag = 'scratch operand']
  #allocation3 [shape = 'f32[16,32]{1,0:T(8,128)}', space=vmem, size = 0x2000, scoped, tag = 'scratch operand']
  %s0 = inlined_call_operand.vmem [shape: f32[16,32], index: 0, kind: input, shape index: {}]
  %s1 = inlined_call_operand.vmem [shape: f32[1,32], index: 1, kind: input, shape index: {}]
  %s2 = inlined_call_operand.vmem [shape: f32[1,32], index: 2, kind: input, shape index: {}]
  %s3 = inlined_call_operand.vmem [shape: f32[32,128], index: 3, kind: input, shape index: {}]
  %s4 = inlined_call_operand.vmem [shape: f32[1,128], index: 4, kind: input, shape index: {}]
  %s5 = inlined_call_operand.vmem [shape: f32[128,32], index: 5, kind: input, shape index: {}]
  %s6 = inlined_call_operand.vmem [shape: f32[1,32], index: 6, kind: input, shape index: {}]
  %s7 = inlined_call_operand.vmem [shape: f32[16,32], index: 7, kind: output, shape index: {}]
  %s8 = sld [smem:[#allocation0]]
  $region46: #{transformer_forward.8} parent=0
    _
  %s10 = ssub.s32 1, %s8
  %s11 = scalar_select 0, %s10, %s8
  // Predicated region
  $region2: #{transformer_forward.8} parent=0 // pred_check
    _
  $region3: #{transformer_forward.8} parent=0 // pred_check_branch
    %13 = sbr.rel (0) target = $region5
  $region4: #{transformer_forward.8} parent=0 // pred_region
    _
  $region5: #{transformer_forward.8} parent=0 // pred_fallthru
    _
  // Predicated region
  $region6: #{transformer_forward.8} parent=0 // pred_check
    _
  $region7: #{transformer_forward.8} parent=0 // pred_check_branch
    %15 = sbr.rel (0) target = $region9
  $region8: #{transformer_forward.8} parent=0 // pred_region
    _
  $region9: #{transformer_forward.8} parent=0 // pred_fallthru
    _
  // Predicated region
  $region10: #{transformer_forward.8} parent=0 // pred_check
    _
  $region11: #{transformer_forward.8} parent=0 // pred_check_branch
    %17 = sbr.rel (0) target = $region13
  $region12: #{transformer_forward.8} parent=0 // pred_region
    _
  $region13: #{transformer_forward.8} parent=0 // pred_fallthru
    _
  // Predicated region
  $region14: #{transformer_forward.8} parent=0 // pred_check
    _
  $region15: #{transformer_forward.8} parent=0 // pred_check_branch
    %19 = sbr.rel (0) target = $region17
  $region16: #{transformer_forward.8} parent=0 // pred_region
    _
  $region17: #{transformer_forward.8} parent=0 // pred_fallthru
    _
  // Predicated region
  $region18: #{transformer_forward.8} parent=0 // pred_check
    _
  $region19: #{transformer_forward.8} parent=0 // pred_check_branch
    %21 = sbr.rel (0) target = $region21
  $region20: #{transformer_forward.8} parent=0 // pred_region
    _
  $region21: #{transformer_forward.8} parent=0 // pred_fallthru
    _
  // Predicated region
  $region22: #{transformer_forward.8} parent=0 // pred_check
    _
  $region23: #{transformer_forward.8} parent=0 // pred_check_branch
    %23 = sbr.rel (0) target = $region25
  $region24: #{transformer_forward.8} parent=0 // pred_region
    _
  $region25: #{transformer_forward.8} parent=0 // pred_fallthru
    _
  // Predicated region
  $region26: #{transformer_forward.8} parent=0 // pred_check
    _
  $region27: #{transformer_forward.8} parent=0 // pred_check_branch
    %25 = sbr.rel (0) target = $region29
  $region28: #{transformer_forward.8} parent=0 // pred_region
    _
  $region29: #{transformer_forward.8} parent=0 // pred_fallthru
    _
  %p26 = scmp.eq.s32.totalorder 0, 0
  // Predicated region
  $region30: #{transformer_forward.8} parent=0 // pred_check
    %p27 = pneg %p26
  $region31: #{transformer_forward.8} parent=0 // pred_check_branch
    %29 = sbr.rel (%p27) target = $region33
  $region32: #{transformer_forward.8} parent=0 // pred_region
    %v30 = vld [vmem:[%s0] sm:$0xff]
    %v31 = vld [vmem:[%s0 + $0x8] sm:$0xff]
    %v32 = vld [vmem:[%s1] sm:$0x1]
    %v33 = vld [vmem:[%s2] sm:$0x1]
    %vm34 = vcmask 261120
    %v35 = vsel %vm34, %v30, 0.0
    %36 = vadd.xlane.f32.xlu0 %v35
    %v37 = vpop.xlane.xlu0 %36
    %v38 = vsel %vm34, %v31, 0.0
    %39 = vadd.xlane.f32.xlu0 %v38
    %v40 = vpop.xlane.xlu0 %39
    %v41 = vmul.f32 %v37, 0.03125
    %v42 = vmul.f32 %v40, 0.03125
    %v43 = vsub.f32 %v30, %v41
    %v44 = vsub.f32 %v31, %v42
    %v45 = vmul.f32 %v43, %v43
    %v46 = vmul.f32 %v44, %v44
    %v47 = vsel %vm34, %v45, 0.0
    %48 = vadd.xlane.f32.xlu0 %v47
    %v49 = vpop.xlane.xlu0 %48
    %v50 = vsel %vm34, %v46, 0.0
    %51 = vadd.xlane.f32.xlu0 %v50
    %v52 = vpop.xlane.xlu0 %51
    %v53 = vmul.f32 %v49, 0.03125
    %v54 = vmul.f32 %v52, 0.03125
    %v55 = vadd.f32 %v53, 1e-05
    %v56 = vadd.f32 %v54, 1e-05
    %v57 = vrsqrt.pop %v55
    %v58 = vmul.f32 %v57, %v55
    %v59 = vmul.f32 %v58, %v57
    %v60 = vmul.f32 0.5, %v59
    %v61 = vsub.f32 1.5, %v60
    %v62 = vmul.f32 %v57, %v61
    %vm63 = vweird.f32 %v55
    %vm64 = vweird.f32 %v57
    %vm65 = vmor %vm63, %vm64
    %v66 = vsel %vm65, %v57, %v62
    %v67 = vrsqrt.pop %v56
    %v68 = vmul.f32 %v67, %v56
    %v69 = vmul.f32 %v68, %v67
    %v70 = vmul.f32 0.5, %v69
    %v71 = vsub.f32 1.5, %v70
    %v72 = vmul.f32 %v67, %v71
    %vm73 = vweird.f32 %v56
    %vm74 = vweird.f32 %v67
    %vm75 = vmor %vm73, %vm74
    %v76 = vsel %vm75, %v67, %v72
    %v77 = vmul.f32 %v43, %v66
    %v78 = vmul.f32 %v44, %v76
    %v80 = vperm.slane %v32, 0
    %v82 = vmul.f32 %v77, %v80
    %v83 = vmul.f32 %v78, %v80
    %v85 = vperm.slane %v33, 0
    %v87 = vadd.f32 %v82, %v85
    %v88 = vadd.f32 %v83, %v85
    %89 = vst.msk [vmem:[#allocation2] sm:$0xff] %vm34, %v87
    %90 = vst.msk [vmem:[#allocation2 + $0x8] sm:$0xff] %vm34, %v88
    %v91 = vld [vmem:[%s6] sm:$0x1]
    %v93 = vperm.slane %v91, 0
    %v95 = vadd.f32 %v30, %v93
    %v96 = vadd.f32 %v31, %v93
    %97 = vst.msk [vmem:[#allocation3] sm:$0xff] %vm34, %v95
    %98 = vst.msk [vmem:[#allocation3 + $0x8] sm:$0xff] %vm34, %v96
  $region33: #{transformer_forward.8} parent=0 // pred_fallthru
    _
  %v99 = vld [vmem:[#allocation2] sm:$0xff]
  %v100 = vld [vmem:[#allocation2 + $0x8] sm:$0xff]
  %v101 = vld [vmem:[%s3] sm:$0xff]
  %v102 = vld [vmem:[%s3 + $0x8] sm:$0xff]
  %v103 = vld [vmem:[%s3 + $0x10] sm:$0xff]
  %v104 = vld [vmem:[%s3 + $0x18] sm:$0xff]
  %v105 = vld [vmem:[%s4] sm:$0x1]
  %v107 = vperm.slane %v105, 0
  %vm109 = vcmask 261120
  %v111 = vsel %vm109, %v99, 0
  %v114 = vsel %vm109, %v100, 0
  %116 = vmatpush.msra.mxu0 0.0
  %117 = vmatpush.msra.mxu0 0.0
  %118 = vmatpush.msra.mxu0 0.0
  %119 = vmatpush.msra.mxu0 0.0
  %120 = vmatpush.msra.mxu0 0.0
  %121 = vmatpush.msra.mxu0 0.0
  %122 = vmatpush.msra.mxu0 0.0
  %123 = vmatpush.msra.mxu0 0.0
  %124 = vmatpush.msra.mxu0 0.0
  %125 = vmatpush.msra.mxu0 0.0
  %126 = vmatpush.msra.mxu0 0.0
  %127 = vmatpush.msra.mxu0 0.0
  %128 = vmatpush.msra.mxu0 %v104
  %129 = vmatpush.msra.mxu0 %v103
  %130 = vmatpush.msra.mxu0 %v102
  %131 = vmatpush.msra.mxu0 %v101
  %132 = vmatmul.f32.gmra.mxu0 %v111
  %v133 = vpop.f32.mrf.mxu0
  %v134 = vadd.f32 %v107, %v133
  %135 = vmatmul.f32.gmra.mxu0 %v114
  %v136 = vpop.f32.mrf.mxu0
  %v137 = vadd.f32 %v107, %v136
  %138 = vdwg.mxu0
  %v139 = vmul.f32 %v134, 0.5
  %v140 = vmul.f32 %v137, 0.5
  %v141 = vmul.f32 %v134, 0.70710677
  %v142 = vmul.f32 %v137, 0.70710677
  %vm143 = vcmp.lt.f32.partialorder %v141, 0.0
  %vm144 = vcmp.lt.f32.partialorder %v142, 0.0
  %v145 = vsel %vm143, -1.0, 1.0
  %v146 = vsel %vm144, -1.0, 1.0
  %v147 = vand.u32 2147483647, %v141
  %v148 = vand.u32 2147483647, %v142
  %v149 = vmul.f32 %v147, 0.3275911
  %v150 = vmul.f32 %v148, 0.3275911
  %v151 = vadd.f32 %v149, 1.0
  %v152 = vadd.f32 %v150, 1.0
  %v153 = vrcp.pop %v151
  %v154 = vmul.f32 %v151, %v153
  %v155 = vsub.f32 1.0, %v154
  %v156 = vmul.f32 %v153, %v155
  %v157 = vadd.f32 %v153, %v156
  %vm158 = vweird.f32 %v151
  %vm159 = vweird.f32 %v153
  %vm160 = vmor %vm158, %vm159
  %v161 = vsel %vm160, %v153, %v157
  %v162 = vand.u32 2147483647, %v151
  %vm163 = vcmp.eq.f32.partialorder %v162, 8.507059e+37
  %v164 = vand.u32 %v151, 2147483648
  %v165 = vor.u32 1.1754944e-38, %v164
  %v166 = vsel %vm163, %v165, %v161
  %v167 = vmul.f32 1.0, %v166
  %v168 = vrcp.pop %v152
  %v169 = vmul.f32 %v152, %v168
  %v170 = vsub.f32 1.0, %v169
  %v171 = vmul.f32 %v168, %v170
  %v172 = vadd.f32 %v168, %v171
  %vm173 = vweird.f32 %v152
  %vm174 = vweird.f32 %v168
  %vm175 = vmor %vm173, %vm174
  %v176 = vsel %vm175, %v168, %v172
  %v177 = vand.u32 2147483647, %v152
  %vm178 = vcmp.eq.f32.partialorder %v177, 8.507059e+37
  %v179 = vand.u32 %v152, 2147483648
  %v180 = vor.u32 1.1754944e-38, %v179
  %v181 = vsel %vm178, %v180, %v176
  %v182 = vmul.f32 1.0, %v181
  %v183 = vmul.f32 %v167, 1.0614054
  %v184 = vmul.f32 %v182, 1.0614054
  %v185 = vadd.f32 %v183, -1.4531521
  %v186 = vadd.f32 %v184, -1.4531521
  %v187 = vmul.f32 %v185, %v167
  %v188 = vmul.f32 %v186, %v182
  %v189 = vadd.f32 %v187, 1.4214138
  %v190 = vadd.f32 %v188, 1.4214138
  %v191 = vmul.f32 %v189, %v167
  %v192 = vmul.f32 %v190, %v182
  %v193 = vadd.f32 %v191, -0.28449672
  %v194 = vadd.f32 %v192, -0.28449672
  %v195 = vmul.f32 %v193, %v167
  %v196 = vmul.f32 %v194, %v182
  %v197 = vadd.f32 %v195, 0.2548296
  %v198 = vadd.f32 %v196, 0.2548296
  %v199 = vmul.f32 %v197, %v167
  %v200 = vmul.f32 %v198, %v182
  %v201 = vsub.f32 0.0, %v147
  %v202 = vsub.f32 0.0, %v148
  %v203 = vmul.f32 %v201, %v147
  %v204 = vmul.f32 %v202, %v148
  %v205 = vmul.f32 %v203, 1.442695
  %v206 = vpow.pop %v205
  %v207 = vmul.f32 %v204, 1.442695
  %v208 = vpow.pop %v207
  %v209 = vmul.f32 %v199, %v206
  %v210 = vmul.f32 %v200, %v208
  %v211 = vsub.f32 1.0, %v209
  %v212 = vsub.f32 1.0, %v210
  %v213 = vmul.f32 %v145, %v211
  %v214 = vmul.f32 %v146, %v212
  %v215 = vadd.f32 %v213, 1.0
  %v216 = vadd.f32 %v214, 1.0
  %v217 = vmul.f32 %v139, %v215
  %v218 = vmul.f32 %v140, %v216
  %v219 = vld [vmem:[#allocation3] sm:$0xff]
  %v220 = vld [vmem:[#allocation3 + $0x8] sm:$0xff]
  %v221 = vld [vmem:[%s5] sm:$0xff]
  %v222 = vld [vmem:[%s5 + $0x8] sm:$0xff]
  %v223 = vld [vmem:[%s5 + $0x10] sm:$0xff]
  %v224 = vld [vmem:[%s5 + $0x18] sm:$0xff]
  %v225 = vld [vmem:[%s5 + $0x20] sm:$0xff]
  %v226 = vld [vmem:[%s5 + $0x28] sm:$0xff]
  %v227 = vld [vmem:[%s5 + $0x30] sm:$0xff]
  %v228 = vld [vmem:[%s5 + $0x38] sm:$0xff]
  %v229 = vld [vmem:[%s5 + $0x40] sm:$0xff]
  %v230 = vld [vmem:[%s5 + $0x48] sm:$0xff]
  %v231 = vld [vmem:[%s5 + $0x50] sm:$0xff]
  %v232 = vld [vmem:[%s5 + $0x58] sm:$0xff]
  %v233 = vld [vmem:[%s5 + $0x60] sm:$0xff]
  %v234 = vld [vmem:[%s5 + $0x68] sm:$0xff]
  %v235 = vld [vmem:[%s5 + $0x70] sm:$0xff]
  %v236 = vld [vmem:[%s5 + $0x78] sm:$0xff]
  %237 = vmatpush.msra.mxu0 %v236
  %238 = vmatpush.msra.mxu0 %v235
  %239 = vmatpush.msra.mxu0 %v234
  %240 = vmatpush.msra.mxu0 %v233
  %241 = vmatpush.msra.mxu0 %v232
  %242 = vmatpush.msra.mxu0 %v231
  %243 = vmatpush.msra.mxu0 %v230
  %244 = vmatpush.msra.mxu0 %v229
  %245 = vmatpush.msra.mxu0 %v228
  %246 = vmatpush.msra.mxu0 %v227
  %247 = vmatpush.msra.mxu0 %v226
  %248 = vmatpush.msra.mxu0 %v225
  %249 = vmatpush.msra.mxu0 %v224
  %250 = vmatpush.msra.mxu0 %v223
  %251 = vmatpush.msra.mxu0 %v222
  %252 = vmatpush.msra.mxu0 %v221
  %253 = vmatmul.f32.gmra.mxu0 %v217
  %v254 = vpop.f32.mrf.mxu0
  %v255 = vadd.f32 0.0, %v254
  %256 = vmatmul.f32.gmra.mxu0 %v218
  %v257 = vpop.f32.mrf.mxu0
  %v258 = vadd.f32 0.0, %v257
  %259 = vdwg.mxu0
  %v260 = vadd.f32 %v219, %v255
  %v261 = vadd.f32 %v220, %v258
  %262 = vst.msk [vmem:[#allocation3] sm:$0xff] %vm109, %v260
  %263 = vst.msk [vmem:[#allocation3 + $0x8] sm:$0xff] %vm109, %v261
  // Predicated region
  $region34: #{transformer_forward.8} parent=0 // pred_check
    %p264 = pneg %p26
  $region35: #{transformer_forward.8} parent=0 // pred_check_branch
    %266 = sbr.rel (%p264) target = $region37
  $region36: #{transformer_forward.8} parent=0 // pred_region
    %v267 = vld [vmem:[#allocation3] sm:$0xff]
    %v268 = vld [vmem:[#allocation3 + $0x8] sm:$0xff]
    %269 = vst.msk [vmem:[%s7] sm:$0xff] %vm109, %v267
    %270 = vst.msk [vmem:[%s7 + $0x8] sm:$0xff] %vm109, %v268
  $region37: #{transformer_forward.8} parent=0 // pred_fallthru
    _
  // Predicated region
  $region38: #{transformer_forward.8} parent=0 // pred_check
    _
  $region39: #{transformer_forward.8} parent=0 // pred_check_branch
    %272 = sbr.rel (0) target = $region41
  $region40: #{transformer_forward.8} parent=0 // pred_region
    _
  $region41: #{transformer_forward.8} parent=0 // pred_fallthru
    _
  // Predicated region
  $region42: #{transformer_forward.8} parent=0 // pred_check
    _
  $region43: #{transformer_forward.8} parent=0 // pred_check_branch
    %274 = sbr.rel (0) target = $region45
  $region44: #{transformer_forward.8} parent=0 // pred_region
    _
  $region45: #{transformer_forward.8} parent=0 // pred_fallthru
    _

</llo_original>
